<compile_context>
chip_gen: v7x
topology: tpu7x:2x2x1
jax: 0.10.0
libtpu: 0.0.40
codegen_flags: <defaults>
</compile_context>

<pallas_src>
import functools

import numpy as np
import jax
import jax.numpy as jnp
from jax.experimental import pallas as pl
from jax.experimental.pallas import tpu as pltpu


_VMEM_LIMIT = 32 * 1024 * 1024   # safe on v5e/v6e (128 MiB) and v7x (64 MiB)
_BN_EPS = 1e-5
_NCLS_PAD = 128                  # lane-dense logits for the 4-class FC head

# MXU-facing tile targets: 128 rows matches v5e's 4x128x128 MXU,
# 256 matches v6e/v7x's 2x256x256 MXU.  Small shapes shrink automatically.
_TM_TARGET = 256
_TN_TARGET = 256
_TK_TARGET = 512


def _round_up(v, m):
    return ((v + m - 1) // m) * m


# --------------------------- tiled matmul kernel -----------------------------
# out = act(x @ w + bias [+ residual] [+ xr @ wd + bd])
# (BN scale is pre-folded into w / wd, so the epilogue is bias-only.)

def _mm_kernel(*refs, relu, has_res, has_rmm):
    it = iter(refs)
    x_ref = next(it)
    w_ref = next(it)
    b_ref = next(it)
    r_ref = next(it) if has_res else None
    if has_rmm:
        xr_ref = next(it)
        wd_ref = next(it)
        bd_ref = next(it)
    o_ref = next(it)
    acc_ref = next(it)

    @pl.when(pl.program_id(2) == 0)
    def _():
        acc_ref[...] = jnp.zeros_like(acc_ref)

    acc_ref[...] += jnp.dot(x_ref[...], w_ref[...],
                            preferred_element_type=jnp.float32)

    @pl.when(pl.program_id(2) == pl.num_programs(2) - 1)
    def _():
        out = acc_ref[...] + b_ref[...]
        if has_res:
            out = out + r_ref[...].astype(jnp.float32)
        if has_rmm:
            out = out + jnp.dot(xr_ref[...], wd_ref[...],
                                preferred_element_type=jnp.float32) + bd_ref[...]
        if relu:
            out = jnp.maximum(out, 0.0)
        o_ref[...] = out.astype(o_ref.dtype)


def matmul_bias_act(x, w, bias, *, residual=None, res_mm=None, relu=True,
                    out_dtype=jnp.bfloat16,
                    tm_target=_TM_TARGET, tn_target=_TN_TARGET,
                    tk_target=_TK_TARGET):
    """Fused (1x1-conv-as-matmul) + folded-BN bias (+ residual / fused
    downsample matmul) (+ ReLU).  bf16 inputs, f32 accumulation."""
    M, K = x.shape
    Cout = w.shape[1]

    tm = min(tm_target, _round_up(M, 8))
    Mp = _round_up(M, tm)                       # padding is a tile multiple now
    tn = tn_target if Cout > tn_target else Cout
    Coutp = _round_up(Cout, tn)
    if res_mm is not None:
        tk = K                                  # single K tile: fused 2nd matmul runs once
    else:
        tk = tk_target if K > tk_target else K
    Kp = _round_up(K, tk)

    xb = x.astype(jnp.bfloat16)
    if (Mp, Kp) != (M, K):
        xb = jnp.pad(xb, ((0, Mp - M), (0, Kp - K)))
    wb = w.astype(jnp.bfloat16)
    if (Kp, Coutp) != (K, Cout):
        wb = jnp.pad(wb, ((0, Kp - K), (0, Coutp - Cout)))
    b2 = bias.astype(jnp.float32)
    if Coutp != Cout:
        b2 = jnp.pad(b2, ((0, Coutp - Cout),))
    b2 = b2.reshape(1, Coutp)

    in_specs = [
        pl.BlockSpec((tm, tk), lambda i, j, k: (i, k)),
        pl.BlockSpec((tk, tn), lambda i, j, k: (k, j)),
        pl.BlockSpec((1, tn), lambda i, j, k: (0, j)),
    ]
    args = [xb, wb, b2]

    if residual is not None:
        rb = residual.astype(jnp.bfloat16)
        if (Mp, Coutp) != residual.shape:
            rb = jnp.pad(rb, ((0, Mp - M), (0, Coutp - Cout)))
        in_specs.append(pl.BlockSpec((tm, tn), lambda i, j, k: (i, j)))
        args.append(rb)

    if res_mm is not None:
        xr, wd, bd = res_mm
        Kd = xr.shape[1]
        xrb = xr.astype(jnp.bfloat16)
        if Mp != M:
            xrb = jnp.pad(xrb, ((0, Mp - M), (0, 0)))
        wdb = wd.astype(jnp.bfloat16)
        bd2 = bd.astype(jnp.float32)
        if Coutp != Cout:
            wdb = jnp.pad(wdb, ((0, 0), (0, Coutp - Cout)))
            bd2 = jnp.pad(bd2, ((0, Coutp - Cout),))
        bd2 = bd2.reshape(1, Coutp)
        in_specs += [
            pl.BlockSpec((tm, Kd), lambda i, j, k: (i, 0)),
            pl.BlockSpec((Kd, tn), lambda i, j, k: (0, j)),
            pl.BlockSpec((1, tn), lambda i, j, k: (0, j)),
        ]
        args += [xrb, wdb, bd2]

    kernel = functools.partial(_mm_kernel, relu=relu,
                               has_res=residual is not None,
                               has_rmm=res_mm is not None)
    out = pl.pallas_call(
        kernel,
        out_shape=jax.ShapeDtypeStruct((Mp, Coutp), out_dtype),
        grid=(Mp // tm, Coutp // tn, Kp // tk),
        in_specs=in_specs,
        out_specs=pl.BlockSpec((tm, tn), lambda i, j, k: (i, j)),
        scratch_shapes=[pltpu.VMEM((tm, tn), jnp.float32)],
        compiler_params=pltpu.CompilerParams(
            dimension_semantics=("parallel", "parallel", "arbitrary"),
            vmem_limit_bytes=_VMEM_LIMIT),
    )(*args)
    if (Mp, Coutp) != (M, Cout):
        out = out[:M, :Cout]
    return out


# -------------------------- fused 3x3 conv kernel ----------------------------
# The padded activation is flattened (per phase for stride 2) so each of the 9
# taps is a constant row shift of a 2-D (rows, Cin) slab; no HBM im2col.

def _pack_conv3x3_input(x, stride):
    N, H, W, C = x.shape
    xp = jnp.pad(x, ((0, 0), (1, 1), (1, 1), (0, 0)))
    Hp, Wp = H + 2, W + 2
    Ho = (Hp - 3) // stride + 1
    Wo = (Wp - 3) // stride + 1
    if stride == 1:
        Hh, Wh = Hp, Wp
        phases = [xp]
        taps = [(0, dy * Wh + dx) for dy in range(3) for dx in range(3)]
    else:  # stride 2: split into the 4 sampling phases (even/odd rows & cols)
        He, We = Hp + (Hp % 2), Wp + (Wp % 2)
        xp = jnp.pad(xp, ((0, 0), (0, He - Hp), (0, We - Wp), (0, 0)))
        Hh, Wh = He // 2, We // 2
        phases = [xp[:, p::2, q::2, :] for p in range(2) for q in range(2)]
        taps = [((dy % 2) * 2 + (dx % 2), (dy // 2) * Wh + (dx // 2))
                for dy in range(3) for dx in range(3)]
    P = jnp.stack([ph.reshape(N, Hh * Wh, C) for ph in phases], axis=1)
    Ro = _round_up(Ho * Wh, 8)
    maxoff = max(off for _, off in taps)
    rneed = Ro + maxoff
    if rneed > Hh * Wh:
        P = jnp.pad(P, ((0, 0), (0, 0), (0, rneed - Hh * Wh), (0, 0)))
    return P, taps, Ho, Wo, Wh, Ro


def _conv3x3_kernel(p_ref, w_ref, b_ref, o_ref, *, taps, relu):
    rows = o_ref.shape[1]
    acc = jnp.zeros((rows, o_ref.shape[2]), jnp.float32)
    for t, (ph, off) in enumerate(taps):
        lhs = p_ref[0, ph, pl.ds(off, rows), :]            # (rows, Cin) bf16
        acc = acc + jnp.dot(lhs, w_ref[t],
                            preferred_element_type=jnp.float32)
    acc = acc + b_ref[...]
    if relu:
        acc = jnp.maximum(acc, 0.0)
    o_ref[0] = acc.astype(o_ref.dtype)


def conv3x3_bn_relu(x, w9, bias, *, stride, out_dtype=jnp.bfloat16):
    """3x3 conv (padding=1, stride 1 or 2) + folded-BN bias + ReLU, fused."""
    N, H, W, Cin = x.shape
    Cout = w9.shape[-1]
    x = x.astype(jnp.bfloat16)
    P, taps, Ho, Wo, Wh, Ro = _pack_conv3x3_input(x, stride)
    NPH, Rp = P.shape[1], P.shape[2]

    tn = Cout if Cout <= 512 else 256
    Coutp = _round_up(Cout, tn)
    w9b = w9.astype(jnp.bfloat16)
    b2 = bias.astype(jnp.float32)
    if Coutp != Cout:
        w9b = jnp.pad(w9b, ((0, 0), (0, 0), (0, Coutp - Cout)))
        b2 = jnp.pad(b2, ((0, Coutp - Cout),))
    b2 = b2.reshape(1, Coutp)

    kernel = functools.partial(_conv3x3_kernel, taps=tuple(taps), relu=True)
    out = pl.pallas_call(
        kernel,
        out_shape=jax.ShapeDtypeStruct((N, Ro, Coutp), out_dtype),
        grid=(N, Coutp // tn),
        in_specs=[
            pl.BlockSpec((1, NPH, Rp, Cin), lambda n, j: (n, 0, 0, 0)),
            pl.BlockSpec((9, Cin, tn), lambda n, j: (0, 0, j)),
            pl.BlockSpec((1, tn), lambda n, j: (0, j)),
        ],
        out_specs=pl.BlockSpec((1, Ro, tn), lambda n, j: (n, 0, j)),
        compiler_params=pltpu.CompilerParams(
            dimension_semantics=("parallel", "parallel"),
            vmem_limit_bytes=_VMEM_LIMIT),
    )(P, w9b, b2)
    # drop the junk columns that live in the pad positions of the flat layout
    y = out[:, :Ho * Wh, :Cout].reshape(N, Ho, Wh, Cout)[:, :, :Wo, :]
    return y


# ------------------------------ avg pool / FC --------------------------------

def _avgpool_kernel(x_ref, o_ref):
    o_ref[...] = jnp.mean(x_ref[...].astype(jnp.float32), axis=1, keepdims=True)


def adaptive_avgpool_1x1(x_nhwc):
    # TODO(synk): for very large H*W this block should be tiled with a running
    #             sum; fine untiled for head-sized feature maps.
    N, H, W, C = x_nhwc.shape
    x = x_nhwc.reshape(N, H * W, C)
    out = pl.pallas_call(
        _avgpool_kernel,
        out_shape=jax.ShapeDtypeStruct((N, 1, C), jnp.float32),
        grid=(N,),
        in_specs=[pl.BlockSpec((1, H * W, C), lambda n: (n, 0, 0))],
        out_specs=pl.BlockSpec((1, 1, C), lambda n: (n, 0, 0)),
        compiler_params=pltpu.CompilerParams(dimension_semantics=("parallel",)),
    )(x)
    return out[:, 0, :]


def _fc_ce_kernel(x_ref, w_ref, b_ref, oh_ref, logits_ref, loss_ref, *,
                  loss_scale, n_rows):
    logits = jnp.dot(x_ref[...], w_ref[...],
                     preferred_element_type=jnp.float32) + b_ref[...]
    logits_ref[...] = logits                                 # lane-dense (N, 128)
    m = jnp.max(logits, axis=-1, keepdims=True)
    lse = jnp.log(jnp.sum(jnp.exp(logits - m), axis=-1, keepdims=True)) + m
    tgt = jnp.sum(logits * oh_ref[...], axis=-1, keepdims=True)
    loss_ref[...] = jnp.sum(lse - tgt, axis=0, keepdims=True) * (loss_scale / n_rows)


def fc_cross_entropy(feat, w, b, targets, loss_scale):
    """nn.Linear + nn.CrossEntropyLoss(reduction='mean') * loss_scale.
    Classes are padded to 128 (large negative bias) for lane-dense stores."""
    N, _ = feat.shape
    ncls = w.shape[1]
    wp = jnp.pad(w.astype(jnp.float32), ((0, 0), (0, _NCLS_PAD - ncls)))
    bp = jnp.pad(b.astype(jnp.float32), ((0, _NCLS_PAD - ncls),))
    bp = bp + jnp.where(jnp.arange(_NCLS_PAD) < ncls, 0.0, -1e30).astype(jnp.float32)
    onehot = jax.nn.one_hot(targets, _NCLS_PAD, dtype=jnp.float32)
    logits_p, loss = pl.pallas_call(
        functools.partial(_fc_ce_kernel, loss_scale=float(loss_scale), n_rows=N),
        out_shape=(jax.ShapeDtypeStruct((N, _NCLS_PAD), jnp.float32),
                   jax.ShapeDtypeStruct((1, 1), jnp.float32)),
    )(feat.astype(jnp.float32), wp, bp.reshape(1, _NCLS_PAD), onehot)
    return logits_p[:, :ncls], loss[0, 0]


# ------------------------- params (PyTorch-equivalent) -----------------------

def _kaiming(key, shape, fan_out):
    return jax.random.normal(key, shape, dtype=jnp.float32) * np.sqrt(2.0 / fan_out)


def _bn_scale_bias(cout):
    gamma = jnp.ones((cout,), jnp.float32)       # nn.init.constant_(weight, 1)
    beta = jnp.zeros((cout,), jnp.float32)       # nn.init.constant_(bias, 0)
    running_mean = jnp.zeros((cout,), jnp.float32)
    running_var = jnp.ones((cout,), jnp.float32)
    s = gamma / jnp.sqrt(running_var + _BN_EPS)
    return s, beta - running_mean * s


def conv1x1_bn(key, cin, cout):
    w = _kaiming(key, (cout, cin, 1, 1), cout)               # PyTorch OIHW, fan_out
    w = jnp.transpose(w[:, :, 0, 0], (1, 0))                 # (cin, cout)
    s, b = _bn_scale_bias(cout)
    return (w * s[None, :]).astype(jnp.bfloat16), b          # BN scale folded in


def conv3x3_bn(key, cin, cout):
    w = _kaiming(key, (cout, cin, 3, 3), cout * 9)           # PyTorch OIHW, fan_out
    w = jnp.transpose(w, (2, 3, 1, 0)).reshape(9, cin, cout)  # (tap, cin, cout)
    s, b = _bn_scale_bias(cout)
    return (w * s[None, None, :]).astype(jnp.bfloat16), b


def make_bottleneck_params(key, inplanes, planes, stride, with_downsample):
    ks = jax.random.split(key, 4)
    width = planes                                            # groups=1, base_width=64
    p = {'stride': stride}
    p['w1'], p['b1'] = conv1x1_bn(ks[0], inplanes, width)
    p['w2'], p['b2'] = conv3x3_bn(ks[1], width, width)
    p['w3'], p['b3'] = conv1x1_bn(ks[2], width, planes * 4)
    if with_downsample:
        p['wd'], p['bd'] = conv1x1_bn(ks[3], inplanes, planes * 4)
    return p


def bottleneck_forward(x, p):
    """torchvision Bottleneck: 1x1 -> 3x3(stride) -> 1x1, residual, ReLU."""
    N, H, W, C = x.shape
    s = p['stride']
    out = matmul_bias_act(x.reshape(N * H * W, C), p['w1'], p['b1'], relu=True)
    out = out.reshape(N, H, W, -1)
    out = conv3x3_bn_relu(out, p['w2'], p['b2'], stride=s)
    _, Ho, Wo, width = out.shape
    out2d = out.reshape(N * Ho * Wo, width)
    if 'wd' in p:
        # downsample 1x1 fused into the same kernel as conv3 + ReLU
        idn = x[:, ::s, ::s, :].reshape(N * Ho * Wo, C)
        y = matmul_bias_act(out2d, p['w3'], p['b3'], relu=True,
                            res_mm=(idn, p['wd'], p['bd']))
    else:
        idn = x.reshape(N * H * W, C)
        y = matmul_bias_act(out2d, p['w3'], p['b3'], relu=True, residual=idn)
    return y.reshape(N, Ho, Wo, -1)


# --------------------------------- main --------------------------------------

if __name__ == "__main__":
    # synthetic cfg (small shapes)
    N = 2
    CIN = 32                  # channels of the backbone feature fed to the head
    IMG = 16                  # synthetic "crop size" (stand-in for 224)
    LOSS_SCALE = 0.1          # cfg.MODEL.SS.LOSS_SCALE
    DEPTH = 50                # cfg.MODEL.RESNETS.DEPTH
    FEAT_LEVEL = 'res4'       # cfg.MODEL.SS.FEAT_LEVEL
    PIXEL_MEAN = jnp.array([103.53, 116.28, 123.675], jnp.float32)
    PIXEL_STD = jnp.array([57.375, 57.12, 58.395], jnp.float32)

    stage_ids = {'res2': 0, 'res3': 1, 'res4': 2, 'res5': 3}
    num_blocks_per_stage = {50: [3, 4, 6, 3], 101: [3, 4, 23, 3],
                            152: [3, 8, 36, 3]}[DEPTH]
    start_stage = min(stage_ids[FEAT_LEVEL] + 1, 3)   # -> 3 (only layer3)

    # ---------------- deterministic parameter init ----------------
    kroot = jax.random.PRNGKey(0)
    k_img, k_tar, k_stem, k_layers, k_fc = jax.random.split(kroot, 5)

    # stand-in for the external `feat_base` backbone:
    # conv3x3/stride-2 (3 -> CIN) + BN + ReLU, reusing the fused conv kernel.
    stem_w, stem_b = conv3x3_bn(k_stem, 3, CIN)

    inplanes = CIN
    out_channels = inplanes
    layers = []
    lkeys = jax.random.split(k_layers, 4)
    for i in range(start_stage, 4):
        out_channels *= 2
        planes = out_channels // 4
        blocks = num_blocks_per_stage[i]
        bkeys = jax.random.split(lkeys[i], blocks)
        stage = [make_bottleneck_params(bkeys[0], inplanes, planes, stride=2,
                                        with_downsample=True)]
        inplanes = planes * 4
        for bidx in range(1, blocks):
            stage.append(make_bottleneck_params(bkeys[bidx], inplanes, planes,
                                                stride=1, with_downsample=False))
        layers.append(stage)

    fc_w = (jax.random.normal(k_fc, (4, out_channels), jnp.float32)
            * (1.0 / np.sqrt(out_channels)))
    fc_w = jnp.transpose(fc_w, (1, 0))               # (out_channels, 4)
    fc_b = jnp.zeros((4,), jnp.float32)

    # ---------------- gen_ss_inputs: normalize + rot90 targets ----------------
    # TODO(synk): ImageList.from_tensors_crop (resize + random crop) is an
    #             external utility; images are used at their full synthetic size.
    images = jax.random.uniform(k_img, (N, 3, IMG, IMG), jnp.float32, 0.0, 255.0)
    targets = np.asarray(jax.random.randint(k_tar, (N,), 0, 4))
    norm = (images - PIXEL_MEAN.reshape(1, 3, 1, 1)) / PIXEL_STD.reshape(1, 3, 1, 1)
    rotated = jnp.stack(
        [jnp.rot90(norm[i], k=int(targets[i]), axes=(1, 2)) for i in range(N)],
        axis=0)                                      # NCHW, == torch rot90 dims (1,2)
    x = jnp.transpose(rotated, (0, 2, 3, 1))         # NCHW -> NHWC

    # ---------------- forward ----------------
    feat = conv3x3_bn_relu(x, stem_w, stem_b, stride=2)   # feat_base(x)[feat_level]

    for stage in layers:                             # layer{start_stage}..layer3
        for p in stage:
            feat = bottleneck_forward(feat, p)

    pooled = adaptive_avgpool_1x1(feat)              # (N, out_channels) f32
    y = jnp.asarray(targets, jnp.int32)
    logits, loss = fc_cross_entropy(pooled, fc_w, fc_b, y, LOSS_SCALE)
    losses = {'loss_rot_cls': loss}

    jax.block_until_ready((logits, y, losses['loss_rot_cls']))
    print("KERNEL_OK")
</pallas_src>

<mosaic_0001>
module attributes {stable_mosaic.version = 11 : i64} {
  func.func @_conv3x3_kernel(%arg0: i32, %arg1: i32, %arg2: memref<1x4x82x3xbf16, #tpu.memory_space<vmem>>, %arg3: memref<9x3x32xbf16, #tpu.memory_space<vmem>>, %arg4: memref<1x32xf32, #tpu.memory_space<vmem>>, %arg5: memref<1x72x32xbf16, #tpu.memory_space<vmem>>) attributes {dimension_semantics = [#tpu.dimension_semantics<parallel>, #tpu.dimension_semantics<parallel>], iteration_bounds = array<i64: 2, 1>, scalar_prefetch = 0 : i64, scratch_operands = 0 : i64, tpu.core_type = #tpu.core_type<tc>, window_params = [{transform_indices = @transform_0, window_bounds = array<i64: 1, 4, 82, 3>}, {transform_indices = @transform_1, window_bounds = array<i64: 9, 3, 32>}, {transform_indices = @transform_2, window_bounds = array<i64: 1, 32>}, {transform_indices = @transform_3, window_bounds = array<i64: 1, 72, 32>}]} {
    %cst = arith.constant 0.000000e+00 : f32
    %0 = vector.broadcast %cst : f32 to vector<72x32xf32>
    %c0 = arith.constant 0 : index
    %c0_0 = arith.constant 0 : index
    %c0_1 = arith.constant 0 : index
    %c0_2 = arith.constant 0 : index
    %1 = vector.load %arg2[%c0, %c0_0, %c0_1, %c0_2] : memref<1x4x82x3xbf16, #tpu.memory_space<vmem>>, vector<1x1x72x3xbf16>
    %2 = vector.shape_cast %1 : vector<1x1x72x3xbf16> to vector<72x3xbf16>
    %c0_3 = arith.constant 0 : index
    %c0_4 = arith.constant 0 : index
    %c0_5 = arith.constant 0 : index
    %3 = vector.load %arg3[%c0_3, %c0_4, %c0_5] : memref<9x3x32xbf16, #tpu.memory_space<vmem>>, vector<1x3x32xbf16>
    %4 = vector.shape_cast %3 : vector<1x3x32xbf16> to vector<3x32xbf16>
    %cst_6 = arith.constant dense<0.000000e+00> : vector<72x32xf32>
    %5 = tpu.matmul %2, %4, %cst_6 {dimension_numbers = #tpu.dot_dimension_numbers<[1], [0], [0], [1], [0, 0, 1, 1], [], []>} : vector<72x3xbf16>, vector<3x32xbf16>, vector<72x32xf32> -> vector<72x32xf32>
    %6 = arith.addf %0, %5 : vector<72x32xf32>
    %c0_7 = arith.constant 0 : index
    %c1 = arith.constant 1 : index
    %c0_8 = arith.constant 0 : index
    %c0_9 = arith.constant 0 : index
    %7 = vector.load %arg2[%c0_7, %c1, %c0_8, %c0_9] : memref<1x4x82x3xbf16, #tpu.memory_space<vmem>>, vector<1x1x72x3xbf16>
    %8 = vector.shape_cast %7 : vector<1x1x72x3xbf16> to vector<72x3xbf16>
    %c1_10 = arith.constant 1 : index
    %c0_11 = arith.constant 0 : index
    %c0_12 = arith.constant 0 : index
    %9 = vector.load %arg3[%c1_10, %c0_11, %c0_12] : memref<9x3x32xbf16, #tpu.memory_space<vmem>>, vector<1x3x32xbf16>
    %10 = vector.shape_cast %9 : vector<1x3x32xbf16> to vector<3x32xbf16>
    %cst_13 = arith.constant dense<0.000000e+00> : vector<72x32xf32>
    %11 = tpu.matmul %8, %10, %cst_13 {dimension_numbers = #tpu.dot_dimension_numbers<[1], [0], [0], [1], [0, 0, 1, 1], [], []>} : vector<72x3xbf16>, vector<3x32xbf16>, vector<72x32xf32> -> vector<72x32xf32>
    %12 = arith.addf %6, %11 : vector<72x32xf32>
    %c0_14 = arith.constant 0 : index
    %c0_15 = arith.constant 0 : index
    %c1_16 = arith.constant 1 : index
    %c0_17 = arith.constant 0 : index
    %13 = vector.load %arg2[%c0_14, %c0_15, %c1_16, %c0_17] : memref<1x4x82x3xbf16, #tpu.memory_space<vmem>>, vector<1x1x72x3xbf16>
    %14 = vector.shape_cast %13 : vector<1x1x72x3xbf16> to vector<72x3xbf16>
    %c2 = arith.constant 2 : index
    %c0_18 = arith.constant 0 : index
    %c0_19 = arith.constant 0 : index
    %15 = vector.load %arg3[%c2, %c0_18, %c0_19] : memref<9x3x32xbf16, #tpu.memory_space<vmem>>, vector<1x3x32xbf16>
    %16 = vector.shape_cast %15 : vector<1x3x32xbf16> to vector<3x32xbf16>
    %cst_20 = arith.constant dense<0.000000e+00> : vector<72x32xf32>
    %17 = tpu.matmul %14, %16, %cst_20 {dimension_numbers = #tpu.dot_dimension_numbers<[1], [0], [0], [1], [0, 0, 1, 1], [], []>} : vector<72x3xbf16>, vector<3x32xbf16>, vector<72x32xf32> -> vector<72x32xf32>
    %18 = arith.addf %12, %17 : vector<72x32xf32>
    %c0_21 = arith.constant 0 : index
    %c2_22 = arith.constant 2 : index
    %c0_23 = arith.constant 0 : index
    %c0_24 = arith.constant 0 : index
    %19 = vector.load %arg2[%c0_21, %c2_22, %c0_23, %c0_24] : memref<1x4x82x3xbf16, #tpu.memory_space<vmem>>, vector<1x1x72x3xbf16>
    %20 = vector.shape_cast %19 : vector<1x1x72x3xbf16> to vector<72x3xbf16>
    %c3 = arith.constant 3 : index
    %c0_25 = arith.constant 0 : index
    %c0_26 = arith.constant 0 : index
    %21 = vector.load %arg3[%c3, %c0_25, %c0_26] : memref<9x3x32xbf16, #tpu.memory_space<vmem>>, vector<1x3x32xbf16>
    %22 = vector.shape_cast %21 : vector<1x3x32xbf16> to vector<3x32xbf16>
    %cst_27 = arith.constant dense<0.000000e+00> : vector<72x32xf32>
    %23 = tpu.matmul %20, %22, %cst_27 {dimension_numbers = #tpu.dot_dimension_numbers<[1], [0], [0], [1], [0, 0, 1, 1], [], []>} : vector<72x3xbf16>, vector<3x32xbf16>, vector<72x32xf32> -> vector<72x32xf32>
    %24 = arith.addf %18, %23 : vector<72x32xf32>
    %c0_28 = arith.constant 0 : index
    %c3_29 = arith.constant 3 : index
    %c0_30 = arith.constant 0 : index
    %c0_31 = arith.constant 0 : index
    %25 = vector.load %arg2[%c0_28, %c3_29, %c0_30, %c0_31] : memref<1x4x82x3xbf16, #tpu.memory_space<vmem>>, vector<1x1x72x3xbf16>
    %26 = vector.shape_cast %25 : vector<1x1x72x3xbf16> to vector<72x3xbf16>
    %c4 = arith.constant 4 : index
    %c0_32 = arith.constant 0 : index
    %c0_33 = arith.constant 0 : index
    %27 = vector.load %arg3[%c4, %c0_32, %c0_33] : memref<9x3x32xbf16, #tpu.memory_space<vmem>>, vector<1x3x32xbf16>
    %28 = vector.shape_cast %27 : vector<1x3x32xbf16> to vector<3x32xbf16>
    %cst_34 = arith.constant dense<0.000000e+00> : vector<72x32xf32>
    %29 = tpu.matmul %26, %28, %cst_34 {dimension_numbers = #tpu.dot_dimension_numbers<[1], [0], [0], [1], [0, 0, 1, 1], [], []>} : vector<72x3xbf16>, vector<3x32xbf16>, vector<72x32xf32> -> vector<72x32xf32>
    %30 = arith.addf %24, %29 : vector<72x32xf32>
    %c0_35 = arith.constant 0 : index
    %c2_36 = arith.constant 2 : index
    %c1_37 = arith.constant 1 : index
    %c0_38 = arith.constant 0 : index
    %31 = vector.load %arg2[%c0_35, %c2_36, %c1_37, %c0_38] : memref<1x4x82x3xbf16, #tpu.memory_space<vmem>>, vector<1x1x72x3xbf16>
    %32 = vector.shape_cast %31 : vector<1x1x72x3xbf16> to vector<72x3xbf16>
    %c5 = arith.constant 5 : index
    %c0_39 = arith.constant 0 : index
    %c0_40 = arith.constant 0 : index
    %33 = vector.load %arg3[%c5, %c0_39, %c0_40] : memref<9x3x32xbf16, #tpu.memory_space<vmem>>, vector<1x3x32xbf16>
    %34 = vector.shape_cast %33 : vector<1x3x32xbf16> to vector<3x32xbf16>
    %cst_41 = arith.constant dense<0.000000e+00> : vector<72x32xf32>
    %35 = tpu.matmul %32, %34, %cst_41 {dimension_numbers = #tpu.dot_dimension_numbers<[1], [0], [0], [1], [0, 0, 1, 1], [], []>} : vector<72x3xbf16>, vector<3x32xbf16>, vector<72x32xf32> -> vector<72x32xf32>
    %36 = arith.addf %30, %35 : vector<72x32xf32>
    %c0_42 = arith.constant 0 : index
    %c0_43 = arith.constant 0 : index
    %c9 = arith.constant 9 : index
    %c0_44 = arith.constant 0 : index
    %37 = vector.load %arg2[%c0_42, %c0_43, %c9, %c0_44] : memref<1x4x82x3xbf16, #tpu.memory_space<vmem>>, vector<1x1x72x3xbf16>
    %38 = vector.shape_cast %37 : vector<1x1x72x3xbf16> to vector<72x3xbf16>
    %c6 = arith.constant 6 : index
    %c0_45 = arith.constant 0 : index
    %c0_46 = arith.constant 0 : index
    %39 = vector.load %arg3[%c6, %c0_45, %c0_46] : memref<9x3x32xbf16, #tpu.memory_space<vmem>>, vector<1x3x32xbf16>
    %40 = vector.shape_cast %39 : vector<1x3x32xbf16> to vector<3x32xbf16>
    %cst_47 = arith.constant dense<0.000000e+00> : vector<72x32xf32>
    %41 = tpu.matmul %38, %40, %cst_47 {dimension_numbers = #tpu.dot_dimension_numbers<[1], [0], [0], [1], [0, 0, 1, 1], [], []>} : vector<72x3xbf16>, vector<3x32xbf16>, vector<72x32xf32> -> vector<72x32xf32>
    %42 = arith.addf %36, %41 : vector<72x32xf32>
    %c0_48 = arith.constant 0 : index
    %c1_49 = arith.constant 1 : index
    %c9_50 = arith.constant 9 : index
    %c0_51 = arith.constant 0 : index
    %43 = vector.load %arg2[%c0_48, %c1_49, %c9_50, %c0_51] : memref<1x4x82x3xbf16, #tpu.memory_space<vmem>>, vector<1x1x72x3xbf16>
    %44 = vector.shape_cast %43 : vector<1x1x72x3xbf16> to vector<72x3xbf16>
    %c7 = arith.constant 7 : index
    %c0_52 = arith.constant 0 : index
    %c0_53 = arith.constant 0 : index
    %45 = vector.load %arg3[%c7, %c0_52, %c0_53] : memref<9x3x32xbf16, #tpu.memory_space<vmem>>, vector<1x3x32xbf16>
    %46 = vector.shape_cast %45 : vector<1x3x32xbf16> to vector<3x32xbf16>
    %cst_54 = arith.constant dense<0.000000e+00> : vector<72x32xf32>
    %47 = tpu.matmul %44, %46, %cst_54 {dimension_numbers = #tpu.dot_dimension_numbers<[1], [0], [0], [1], [0, 0, 1, 1], [], []>} : vector<72x3xbf16>, vector<3x32xbf16>, vector<72x32xf32> -> vector<72x32xf32>
    %48 = arith.addf %42, %47 : vector<72x32xf32>
    %c0_55 = arith.constant 0 : index
    %c0_56 = arith.constant 0 : index
    %c10 = arith.constant 10 : index
    %c0_57 = arith.constant 0 : index
    %49 = vector.load %arg2[%c0_55, %c0_56, %c10, %c0_57] : memref<1x4x82x3xbf16, #tpu.memory_space<vmem>>, vector<1x1x72x3xbf16>
    %50 = vector.shape_cast %49 : vector<1x1x72x3xbf16> to vector<72x3xbf16>
    %c8 = arith.constant 8 : index
    %c0_58 = arith.constant 0 : index
    %c0_59 = arith.constant 0 : index
    %51 = vector.load %arg3[%c8, %c0_58, %c0_59] : memref<9x3x32xbf16, #tpu.memory_space<vmem>>, vector<1x3x32xbf16>
    %52 = vector.shape_cast %51 : vector<1x3x32xbf16> to vector<3x32xbf16>
    %cst_60 = arith.constant dense<0.000000e+00> : vector<72x32xf32>
    %53 = tpu.matmul %50, %52, %cst_60 {dimension_numbers = #tpu.dot_dimension_numbers<[1], [0], [0], [1], [0, 0, 1, 1], [], []>} : vector<72x3xbf16>, vector<3x32xbf16>, vector<72x32xf32> -> vector<72x32xf32>
    %54 = arith.addf %48, %53 : vector<72x32xf32>
    %c0_61 = arith.constant 0 : index
    %c0_62 = arith.constant 0 : index
    %55 = vector.load %arg4[%c0_61, %c0_62] : memref<1x32xf32, #tpu.memory_space<vmem>>, vector<1x32xf32>
    %56 = vector.broadcast %55 : vector<1x32xf32> to vector<72x32xf32>
    %57 = arith.addf %54, %56 : vector<72x32xf32>
    %cst_63 = arith.constant 0.000000e+00 : f32
    %58 = vector.broadcast %cst_63 : f32 to vector<72x32xf32>
    %59 = arith.maximumf %57, %58 : vector<72x32xf32>
    %60 = arith.truncf %59 : vector<72x32xf32> to vector<72x32xbf16>
    %c0_64 = arith.constant 0 : index
    %c0_65 = arith.constant 0 : index
    %c0_66 = arith.constant 0 : index
    %61 = vector.load %arg5[%c0_64, %c0_65, %c0_66] : memref<1x72x32xbf16, #tpu.memory_space<vmem>>, vector<1x72x32xbf16>
    %62 = vector.shape_cast %61 : vector<1x72x32xbf16> to vector<72x32xbf16>
    %63 = vector.shape_cast %60 : vector<72x32xbf16> to vector<1x72x32xbf16>
    tpu.vector_store %arg5[%c0_64, %c0_65, %c0_66], %63 {strides = array<i32>} : memref<1x72x32xbf16, #tpu.memory_space<vmem>>, vector<1x72x32xbf16>,
    return
  }
  func.func @transform_0(%arg0: i32, %arg1: i32) -> (i32, i32, i32, i32) {
    %c0_i32 = arith.constant 0 : i32
    %c0_i32_0 = arith.constant 0 : i32
    %c0_i32_1 = arith.constant 0 : i32
    %c0_i32_2 = arith.constant 0 : i32
    return %arg0, %c0_i32, %c0_i32_0, %c0_i32_1 : i32, i32, i32, i32
  }
  func.func @transform_1(%arg0: i32, %arg1: i32) -> (i32, i32, i32) {
    %c0_i32 = arith.constant 0 : i32
    %c0_i32_0 = arith.constant 0 : i32
    %c0_i32_1 = arith.constant 0 : i32
    return %c0_i32, %c0_i32_0, %arg1 : i32, i32, i32
  }
  func.func @transform_2(%arg0: i32, %arg1: i32) -> (i32, i32) {
    %c0_i32 = arith.constant 0 : i32
    %c0_i32_0 = arith.constant 0 : i32
    return %c0_i32, %arg1 : i32, i32
  }
  func.func @transform_3(%arg0: i32, %arg1: i32) -> (i32, i32, i32) {
    %c0_i32 = arith.constant 0 : i32
    %c0_i32_0 = arith.constant 0 : i32
    return %arg0, %c0_i32, %arg1 : i32, i32, i32
  }
}

</mosaic_0001>

<llo_original>
// kernel: tpu_custom_call.1
$region0: #{tpu_custom_call.1}
  #allocation0 [shape = 'u32[]', space=smem, size = 0x4, offset = 0x4, fixed_abs, tag = 'smem constant byte address 0x4 - core index']
  #allocation1 [shape = 'u32[144,128]{1,0:T(1,128)}', space=vmem, size = 0x12000, scoped, tag = 'internal scratch']
  %s0 = inlined_call_operand.vmem [shape: bf16[2,4,82,3], index: 0, kind: input, shape index: {}]
  %s1 = inlined_call_operand.vmem [shape: bf16[9,3,32], index: 1, kind: input, shape index: {}]
  %s2 = inlined_call_operand.vmem [shape: f32[1,32], index: 2, kind: input, shape index: {}]
  %s3 = inlined_call_operand.vmem [shape: bf16[2,72,32], index: 3, kind: output, shape index: {}]
  %s4 = sld [smem:[#allocation0]]
  $region45: #{tpu_custom_call.1} parent=0
    _
  %s6 = ssub.s32 1, %s4
  %s7 = scalar_select 0, %s6, %s4
  loop: start=0, step=1, limit=4
  $region2: #{tpu_custom_call.1} parent=0 // loop_pre_header
    _
  $region3: #{tpu_custom_call.1} parent=0 // loop_header
    %s9 = sphi 0, %s13
    %p10 = scmp.ge.s32.totalorder %s9, 4
    %s16 = sphi 0, %s28
    %s17 = sphi 0, %s24
    %s18 = sphi 0, %s16
    %s19 = sphi 0, %s17
    %s20 = sphi 0, %s18
    %s21 = sphi 0, %s19
    %s31 = sphi 0, %s33
    %s34 = sphi 0, %s31
    %s35 = sphi 0, %s34
    %s51 = sphi 0, %s35
    %s57 = sphi 0, %s59
    %s60 = sphi 0, %s57
    %s61 = sphi 0, %s60
    %s77 = sphi 0, %s61
    %s83 = sphi 0, %s85
    %s86 = sphi 0, %s83
    %s87 = sphi 0, %s86
    %s103 = sphi 0, %s87
    %s111 = sphi 0, %s113
    %s114 = sphi 0, %s111
    %s115 = sphi 0, %s114
    %s131 = sphi 0, %s115
  $region4: #{tpu_custom_call.1} parent=0 // loop_header_branch
    %12 = sbr.rel (%p10) target = $region8
  $region5: #{tpu_custom_call.1} parent=0 // loop_body
    %s14 = ssub.s32 %s9, 1
    %s15 = ssub.s32 %s9, 2
    %s22 = sadd.s32 1, %s17
    %p23 = scmp.ge.s32.totalorder %s22, 1
    %s24 = scalar_select %p23, 0, %s22
    %s25 = sadd.s32 1, %s16
    %s26 = scalar_select %p23, %s25, %s16
    %p27 = scmp.ge.s32.totalorder %s26, 2
    %s28 = scalar_select %p27, 0, %s26
    %s29 = ssub.s32 %s16, %s28
    %p30 = scmp.eq.s32.totalorder %s29, 0
    %s32 = sadd.s32 %s31, 1
    %s33 = scalar_select %p30, %s31, %s32
    %p36 = pneg %p30
    %p37 = scmp.eq.s32.totalorder %s9, 1
    %p38 = por %p36, %p37
    %p39 = scmp.ne.s32.totalorder %s31, %s34
    %p40 = scmp.eq.s32.totalorder %s9, 0
    %p41 = por %p39, %p40
    %p42 = scmp.ne.s32.totalorder %s31, %s34
    %p43 = scmp.eq.s32.totalorder %s14, 1
    %p44 = por %p42, %p43
    %p45 = scmp.ne.s32.totalorder %s34, %s35
    %p46 = scmp.eq.s32.totalorder %s14, 0
    %p47 = por %p45, %p46
    %p48 = scmp.ne.s32.totalorder %s34, %s35
    %p49 = scmp.eq.s32.totalorder %s15, 1
    %p50 = por %p48, %p49
    %p52 = scmp.ne.s32.totalorder %s35, %s51
    %p53 = scmp.eq.s32.totalorder %s15, 0
    %p54 = por %p52, %p53
    %s55 = ssub.s32 %s17, %s24
    %p56 = scmp.eq.s32.totalorder %s55, 0
    %s58 = sadd.s32 %s57, 1
    %s59 = scalar_select %p56, %s57, %s58
    %p62 = pneg %p56
    %p63 = scmp.eq.s32.totalorder %s9, 1
    %p64 = por %p62, %p63
    %p65 = scmp.ne.s32.totalorder %s57, %s60
    %p66 = scmp.eq.s32.totalorder %s9, 0
    %p67 = por %p65, %p66
    %p68 = scmp.ne.s32.totalorder %s57, %s60
    %p69 = scmp.eq.s32.totalorder %s14, 1
    %p70 = por %p68, %p69
    %p71 = scmp.ne.s32.totalorder %s60, %s61
    %p72 = scmp.eq.s32.totalorder %s14, 0
    %p73 = por %p71, %p72
    %p74 = scmp.ne.s32.totalorder %s60, %s61
    %p75 = scmp.eq.s32.totalorder %s15, 1
    %p76 = por %p74, %p75
    %p78 = scmp.ne.s32.totalorder %s61, %s77
    %p79 = scmp.eq.s32.totalorder %s15, 0
    %p80 = por %p78, %p79
    %s81 = ssub.s32 %s17, %s24
    %p82 = scmp.eq.s32.totalorder %s81, 0
    %s84 = sadd.s32 %s83, 1
    %s85 = scalar_select %p82, %s83, %s84
    %p88 = pneg %p82
    %p89 = scmp.eq.s32.totalorder %s9, 1
    %p90 = por %p88, %p89
    %p91 = scmp.ne.s32.totalorder %s83, %s86
    %p92 = scmp.eq.s32.totalorder %s9, 0
    %p93 = por %p91, %p92
    %p94 = scmp.ne.s32.totalorder %s83, %s86
    %p95 = scmp.eq.s32.totalorder %s14, 1
    %p96 = por %p94, %p95
    %p97 = scmp.ne.s32.totalorder %s86, %s87
    %p98 = scmp.eq.s32.totalorder %s14, 0
    %p99 = por %p97, %p98
    %p100 = scmp.ne.s32.totalorder %s86, %s87
    %p101 = scmp.eq.s32.totalorder %s15, 1
    %p102 = por %p100, %p101
    %p104 = scmp.ne.s32.totalorder %s87, %s103
    %p105 = scmp.eq.s32.totalorder %s15, 0
    %p106 = por %p104, %p105
    %s107 = ssub.s32 %s16, %s28
    %s108 = ssub.s32 %s17, %s24
    %s109 = sor.u32 %s107, %s108
    %p110 = scmp.eq.s32.totalorder %s109, 0
    %s112 = sadd.s32 %s111, 1
    %s113 = scalar_select %p110, %s111, %s112
    %p116 = pneg %p110
    %p117 = scmp.eq.s32.totalorder %s9, 1
    %p118 = por %p116, %p117
    %p119 = scmp.ne.s32.totalorder %s111, %s114
    %p120 = scmp.eq.s32.totalorder %s9, 0
    %p121 = por %p119, %p120
    %p122 = scmp.ne.s32.totalorder %s111, %s114
    %p123 = scmp.eq.s32.totalorder %s14, 1
    %p124 = por %p122, %p123
    %p125 = scmp.ne.s32.totalorder %s114, %s115
    %p126 = scmp.eq.s32.totalorder %s14, 0
    %p127 = por %p125, %p126
    %p128 = scmp.ne.s32.totalorder %s114, %s115
    %p129 = scmp.eq.s32.totalorder %s15, 1
    %p130 = por %p128, %p129
    %p132 = scmp.ne.s32.totalorder %s115, %s131
    %p133 = scmp.eq.s32.totalorder %s15, 0
    %p134 = por %p132, %p133
    %p135 = scmp.le.s32.totalorder 1, %s9
    %p136 = scmp.lt.s32.totalorder %s9, 3
    %p137 = pnand %p135, %p136
    %p138 = pneg %p137
    // Predicated region
    $region9: #{tpu_custom_call.1} parent=5 // pred_check
      _
    $region10: #{tpu_custom_call.1} parent=5 // pred_check_branch
      %140 = sbr.rel (%p137) target = $region12
    $region11: #{tpu_custom_call.1} parent=5 // pred_region
      %s141 = ssub.s32 %s9, 1
      // Predicated region
      $region13: #{tpu_custom_call.1} parent=11 // pred_check
        %p142 = pneg %p73
      $region14: #{tpu_custom_call.1} parent=11 // pred_check_branch
        %144 = sbr.rel (%p142) target = $region16
      $region15: #{tpu_custom_call.1} parent=11 // pred_region
        %p145 = scmp.lt.s32.totalorder %s19, 0
        %s146 = scalar_select %p145, %s19, 0
        %s147 = smul.addr %s146, 2
        %s148 = scalar_lea.vmem %s1, %s147
      $region16: #{tpu_custom_call.1} parent=11 // pred_fallthru
        _
      // Predicated region
      $region17: #{tpu_custom_call.1} parent=11 // pred_check
        %p149 = pneg %p99
      $region18: #{tpu_custom_call.1} parent=11 // pred_check_branch
        %151 = sbr.rel (%p149) target = $region20
      $region19: #{tpu_custom_call.1} parent=11 // pred_region
        %p152 = scmp.lt.s32.totalorder %s19, 0
        %s153 = scalar_select %p152, %s19, 0
        %s154 = scalar_lea.vmem %s2, %s153
      $region20: #{tpu_custom_call.1} parent=11 // pred_fallthru
        _
    $region12: #{tpu_custom_call.1} parent=5 // pred_fallthru
      _
    %p155 = scmp.lt.s32.totalorder %s9, 2
    // Predicated region
    $region21: #{tpu_custom_call.1} parent=5 // pred_check
      %p156 = pneg %p155
    $region22: #{tpu_custom_call.1} parent=5 // pred_check_branch
      %158 = sbr.rel (%p156) target = $region24
    $region23: #{tpu_custom_call.1} parent=5 // pred_region
      // Predicated region
      $region25: #{tpu_custom_call.1} parent=23 // pred_check
        %p159 = pneg %p41
      $region26: #{tpu_custom_call.1} parent=23 // pred_check_branch
        %161 = sbr.rel (%p159) target = $region28
      $region27: #{tpu_custom_call.1} parent=23 // pred_region
        %p162 = scmp.lt.s32.totalorder %s16, 1
        %s163 = scalar_select %p162, %s16, 1
        %s164 = smul.addr %s163, 44
        %s165 = smul.addr %s164, 4
        %s166 = scalar_lea.vmem %s0, %s165
      $region28: #{tpu_custom_call.1} parent=23 // pred_fallthru
        _
    $region24: #{tpu_custom_call.1} parent=5 // pred_fallthru
      _
    %p167 = scmp.le.s32.totalorder 1, %s9
    %p168 = scmp.lt.s32.totalorder %s9, 3
    %p169 = pnand %p167, %p168
    %p170 = pneg %p169
    // Predicated region
    $region29: #{tpu_custom_call.1} parent=5 // pred_check
      _
    $region30: #{tpu_custom_call.1} parent=5 // pred_check_branch
      %172 = sbr.rel (%p169) target = $region32
    $region31: #{tpu_custom_call.1} parent=5 // pred_region
      %s173 = ssub.s32 %s9, 1
      %p174 = scmp.lt.s32.totalorder %s18, 1
      %s175 = scalar_select %p174, %s18, 1
      %s176 = smul.addr %s175, 44
      %s177 = smul.addr %s176, 4
      %s178 = scalar_lea.vmem %s0, %s177
      %p179 = pneg %p47
      %p180 = pneg %p44
      %p181 = scmp.lt.s32.totalorder %s19, 0
      %s182 = scalar_select %p181, %s19, 0
      %s183 = smul.addr %s182, 2
      %s184 = scalar_lea.vmem %s1, %s183
      %p185 = pneg %p73
      %p186 = pneg %p70
      %p187 = scmp.lt.s32.totalorder %s19, 0
      %s188 = scalar_select %p187, %s19, 0
      %s189 = scalar_lea.vmem %s2, %s188
      %p190 = pneg %p99
      %p191 = pneg %p96
      %p192 = pneg %p127
      %p193 = pneg %p124
      %p194 = scmp.lt.s32.totalorder %s18, 1
      %s195 = scalar_select %p194, %s18, 1
      %p196 = scmp.lt.s32.totalorder %s19, 0
      %s197 = scalar_select %p196, %s19, 0
      %s198 = smul.addr %s195, 9
      %s199 = sadd.s32 %s197, %s198
      %s200 = smul.addr %s199, 4
      %s201 = scalar_lea.vmem %s3, %s200
      %p202 = scmp.lt.s32.totalorder %s18, 1
      %s203 = scalar_select %p202, %s18, 1
      %s204 = smul.addr %s203, 44
      %s205 = smul.addr %s204, 4
      %s206 = scalar_lea.vmem %s0, %s205
      %p207 = scmp.lt.s32.totalorder %s19, 0
      %s208 = scalar_select %p207, %s19, 0
      %s209 = smul.addr %s208, 2
      %s210 = scalar_lea.vmem %s1, %s209
      %p211 = scmp.lt.s32.totalorder %s19, 0
      %s212 = scalar_select %p211, %s19, 0
      %s213 = scalar_lea.vmem %s2, %s212
      %p214 = scmp.lt.s32.totalorder %s18, 1
      %s215 = scalar_select %p214, %s18, 1
      %p216 = scmp.lt.s32.totalorder %s19, 0
      %s217 = scalar_select %p216, %s19, 0
      %s218 = smul.addr %s215, 9
      %s219 = sadd.s32 %s217, %s218
      %s220 = smul.addr %s219, 4
      %s221 = scalar_lea.vmem %s3, %s220
      %v223 = vld [vmem:[%s206] sm:$0xf]
      %v224 = vld [vmem:[%s206 + $0x4] sm:$0xf]
      %v225 = vld [vmem:[%s206 + $0x8] sm:$0xf]
      %v226 = vld [vmem:[%s206 + $0xc] sm:$0xf]
      %v227 = vld [vmem:[%s206 + $0x10] sm:$0xf]
      %v228 = vld [vmem:[%s206 + $0x14] sm:$0xf]
      %v229 = vld [vmem:[%s206 + $0x18] sm:$0xf]
      %v230 = vld [vmem:[%s206 + $0x1c] sm:$0xf]
      %v231 = vld [vmem:[%s206 + $0x20] sm:$0xf]
      %v232 = vld [vmem:[%s210] sm:$0x3]
      %s233 = scalar_lea.vmem %s206, 44
      %v234 = vld [vmem:[%s233] sm:$0xf]
      %v235 = vld [vmem:[%s233 + $0x4] sm:$0xf]
      %v236 = vld [vmem:[%s233 + $0x8] sm:$0xf]
      %v237 = vld [vmem:[%s233 + $0xc] sm:$0xf]
      %v238 = vld [vmem:[%s233 + $0x10] sm:$0xf]
      %v239 = vld [vmem:[%s233 + $0x14] sm:$0xf]
      %v240 = vld [vmem:[%s233 + $0x18] sm:$0xf]
      %v241 = vld [vmem:[%s233 + $0x1c] sm:$0xf]
      %v242 = vld [vmem:[%s233 + $0x20] sm:$0xf]
      %s243 = scalar_lea.vmem %s210, 2
      %v244 = vld [vmem:[%s243] sm:$0x3]
      %v254 = vunpack.c.l.b16 %v234
      %v255 = vunpack.c.l.b16 %v235
      %v256 = vunpack.c.l.b16 %v236
      %v257 = vunpack.c.l.b16 %v237
      %v258 = vunpack.c.l.b16 %v238
      %v259 = vunpack.c.l.b16 %v239
      %v260 = vunpack.c.l.b16 %v240
      %v261 = vunpack.c.l.b16 %v241
      %v262 = vunpack.c.l.b16 %v242
      %v263 = vpack.c.b16 %v255, %v254
      %v264 = vpack.c.b16 %v257, %v256
      %v265 = vpack.c.b16 %v259, %v258
      %v266 = vpack.c.b16 %v261, %v260
      %v267 = vpack.c.b16 %v262, %v262
      %vm268 = vcmask 23552
      %v270 = vsel %vm268, %v263, 0
      %v273 = vsel %vm268, %v264, 0
      %v276 = vsel %vm268, %v265, 0
      %v279 = vsel %vm268, %v266, 0
      %v282 = vsel %vm268, %v267, 0
      %vm284 = vcmask 1040384
      %vm285 = vcmask 1041408
      %v286 = vsel %vm284, 4294967295, 65535
      %v287 = vsel %vm285, %v286, 0
      %v289 = vand.u32 %v244, %v287
      %291 = vmatprep.subr.bf16.mxu0 0
      %292 = vmatpush1.bf16.msra.mxu0 %v289
      %293 = vmatprep.subr.bf16.mxu0 0
      %294 = vmatpush1.bf16.msra.mxu0 0
      %295 = vmatprep.subr.bf16.mxu0 0
      %296 = vmatpush1.bf16.msra.mxu0 0
      %297 = vmatprep.subr.bf16.mxu0 0
      %298 = vmatpush1.bf16.msra.mxu0 0
      %299 = vmatprep.subr.bf16.mxu0 0
      %300 = vmatpush1.bf16.msra.mxu0 0
      %301 = vmatprep.subr.bf16.mxu0 0
      %302 = vmatpush1.bf16.msra.mxu0 0
      %303 = vmatprep.subr.bf16.mxu0 0
      %304 = vmatpush1.bf16.msra.mxu0 0
      %305 = vmatprep.subr.bf16.mxu0 0
      %306 = vmatpush1.bf16.msra.mxu0 0
      %307 = vmatprep.subr.bf16.mxu0 0
      %308 = vmatpush1.bf16.msra.mxu0 0
      %309 = vmatprep.subr.bf16.mxu0 0
      %310 = vmatpush1.bf16.msra.mxu0 0
      %311 = vmatprep.subr.bf16.mxu0 0
      %312 = vmatpush1.bf16.msra.mxu0 0
      %313 = vmatprep.subr.bf16.mxu0 0
      %314 = vmatpush1.bf16.msra.mxu0 0
      %315 = vmatprep.subr.bf16.mxu0 0
      %316 = vmatpush1.bf16.msra.mxu0 0
      %317 = vmatprep.subr.bf16.mxu0 0
      %318 = vmatpush1.bf16.msra.mxu0 0
      %319 = vmatprep.subr.bf16.mxu0 0
      %320 = vmatpush1.bf16.msra.mxu0 0
      %321 = vmatprep.subr.bf16.mxu0 0
      %322 = vmatpush1.bf16.msra.mxu0 0
      %323 = vmatprep.mubr.bf16.mxu0 0
      %324 = vmatmul.mubr.bf16.gmra.mrb[0].mxu0 %v270
      %v325 = vpop.f32.mrb[0].mxu0
      %v326 = vadd.f32 0.0, %v325
      %v327 = vpop.f32.mrb[0].mxu0
      %v328 = vpop.f32.mrb[0].mxu0
      %v329 = vadd.f32 0.0, %v328
      %v330 = vpop.f32.mrb[0].mxu0
      %331 = vmatprep.mubr.bf16.mxu0 0
      %332 = vmatmul.mubr.bf16.gmra.mrb[0].mxu0 %v273
      %v333 = vpop.f32.mrb[0].mxu0
      %v334 = vadd.f32 0.0, %v333
      %v335 = vpop.f32.mrb[0].mxu0
      %v336 = vpop.f32.mrb[0].mxu0
      %v337 = vadd.f32 0.0, %v336
      %v338 = vpop.f32.mrb[0].mxu0
      %339 = vmatprep.mubr.bf16.mxu0 0
      %340 = vmatmul.mubr.bf16.gmra.mrb[0].mxu0 %v276
      %v341 = vpop.f32.mrb[0].mxu0
      %v342 = vadd.f32 0.0, %v341
      %v343 = vpop.f32.mrb[0].mxu0
      %v344 = vpop.f32.mrb[0].mxu0
      %v345 = vadd.f32 0.0, %v344
      %v346 = vpop.f32.mrb[0].mxu0
      %347 = vmatprep.mubr.bf16.mxu0 0
      %348 = vmatmul.mubr.bf16.gmra.mrb[0].mxu0 %v279
      %v349 = vpop.f32.mrb[0].mxu0
      %v350 = vadd.f32 0.0, %v349
      %v351 = vpop.f32.mrb[0].mxu0
      %v352 = vpop.f32.mrb[0].mxu0
      %v353 = vadd.f32 0.0, %v352
      %v354 = vpop.f32.mrb[0].mxu0
      %355 = vmatprep.mubr.bf16.mxu0 0
      %356 = vmatmul.mubr.bf16.gmra.mrb[0].mxu0 %v282
      %v357 = vpop.f32.mrb[0].mxu0
      %v358 = vadd.f32 0.0, %v357
      %v359 = vpop.f32.mrb[0].mxu0
      %v360 = vpop.f32.mrb[0].mxu0
      %v361 = vpop.f32.mrb[0].mxu0
      %362 = vdwg.mxu0
      %v372 = vunpack.c.l.b16 %v223
      %v373 = vunpack.c.l.b16 %v224
      %v374 = vunpack.c.l.b16 %v225
      %v375 = vunpack.c.l.b16 %v226
      %v376 = vunpack.c.l.b16 %v227
      %v377 = vunpack.c.l.b16 %v228
      %v378 = vunpack.c.l.b16 %v229
      %v379 = vunpack.c.l.b16 %v230
      %v380 = vunpack.c.l.b16 %v231
      %v381 = vpack.c.b16 %v373, %v372
      %v382 = vpack.c.b16 %v375, %v374
      %v383 = vpack.c.b16 %v377, %v376
      %v384 = vpack.c.b16 %v379, %v378
      %v385 = vpack.c.b16 %v380, %v380
      %v387 = vsel %vm268, %v381, 0
      %v390 = vsel %vm268, %v382, 0
      %v393 = vsel %vm268, %v383, 0
      %v396 = vsel %vm268, %v384, 0
      %v399 = vsel %vm268, %v385, 0
      %v402 = vand.u32 %v232, %v287
      %404 = vmatprep.subr.bf16.mxu0 0
      %405 = vmatpush1.bf16.msra.mxu0 %v402
      %406 = vmatprep.subr.bf16.mxu0 0
      %407 = vmatpush1.bf16.msra.mxu0 0
      %408 = vmatprep.subr.bf16.mxu0 0
      %409 = vmatpush1.bf16.msra.mxu0 0
      %410 = vmatprep.subr.bf16.mxu0 0
      %411 = vmatpush1.bf16.msra.mxu0 0
      %412 = vmatprep.subr.bf16.mxu0 0
      %413 = vmatpush1.bf16.msra.mxu0 0
      %414 = vmatprep.subr.bf16.mxu0 0
      %415 = vmatpush1.bf16.msra.mxu0 0
      %416 = vmatprep.subr.bf16.mxu0 0
      %417 = vmatpush1.bf16.msra.mxu0 0
      %418 = vmatprep.subr.bf16.mxu0 0
      %419 = vmatpush1.bf16.msra.mxu0 0
      %420 = vmatprep.subr.bf16.mxu0 0
      %421 = vmatpush1.bf16.msra.mxu0 0
      %422 = vmatprep.subr.bf16.mxu0 0
      %423 = vmatpush1.bf16.msra.mxu0 0
      %424 = vmatprep.subr.bf16.mxu0 0
      %425 = vmatpush1.bf16.msra.mxu0 0
      %426 = vmatprep.subr.bf16.mxu0 0
      %427 = vmatpush1.bf16.msra.mxu0 0
      %428 = vmatprep.subr.bf16.mxu0 0
      %429 = vmatpush1.bf16.msra.mxu0 0
      %430 = vmatprep.subr.bf16.mxu0 0
      %431 = vmatpush1.bf16.msra.mxu0 0
      %432 = vmatprep.subr.bf16.mxu0 0
      %433 = vmatpush1.bf16.msra.mxu0 0
      %434 = vmatprep.subr.bf16.mxu0 0
      %435 = vmatpush1.bf16.msra.mxu0 0
      %436 = vmatprep.mubr.bf16.mxu0 0
      %437 = vmatmul.mubr.bf16.gmra.mrb[0].mxu0 %v387
      %v438 = vpop.f32.mrb[0].mxu0
      %v439 = vadd.f32 %v326, %v438
      %v440 = vpop.f32.mrb[0].mxu0
      %v441 = vpop.f32.mrb[0].mxu0
      %v442 = vadd.f32 %v329, %v441
      %v443 = vpop.f32.mrb[0].mxu0
      %444 = vmatprep.mubr.bf16.mxu0 0
      %445 = vmatmul.mubr.bf16.gmra.mrb[0].mxu0 %v390
      %v446 = vpop.f32.mrb[0].mxu0
      %v447 = vadd.f32 %v334, %v446
      %v448 = vpop.f32.mrb[0].mxu0
      %v449 = vpop.f32.mrb[0].mxu0
      %v450 = vadd.f32 %v337, %v449
      %v451 = vpop.f32.mrb[0].mxu0
      %452 = vmatprep.mubr.bf16.mxu0 0
      %453 = vmatmul.mubr.bf16.gmra.mrb[0].mxu0 %v393
      %v454 = vpop.f32.mrb[0].mxu0
      %v455 = vadd.f32 %v342, %v454
      %v456 = vpop.f32.mrb[0].mxu0
      %v457 = vpop.f32.mrb[0].mxu0
      %v458 = vadd.f32 %v345, %v457
      %v459 = vpop.f32.mrb[0].mxu0
      %460 = vmatprep.mubr.bf16.mxu0 0
      %461 = vmatmul.mubr.bf16.gmra.mrb[0].mxu0 %v396
      %v462 = vpop.f32.mrb[0].mxu0
      %v463 = vadd.f32 %v350, %v462
      %v464 = vpop.f32.mrb[0].mxu0
      %v465 = vpop.f32.mrb[0].mxu0
      %v466 = vadd.f32 %v353, %v465
      %v467 = vpop.f32.mrb[0].mxu0
      %468 = vmatprep.mubr.bf16.mxu0 0
      %469 = vmatmul.mubr.bf16.gmra.mrb[0].mxu0 %v399
      %v470 = vpop.f32.mrb[0].mxu0
      %v471 = vadd.f32 %v358, %v470
      %v472 = vpop.f32.mrb[0].mxu0
      %v473 = vpop.f32.mrb[0].mxu0
      %v474 = vpop.f32.mrb[0].mxu0
      %475 = vdwg.mxu0
      %v476 = vld [vmem:[%s206] sm:$0xf]
      %v477 = vld [vmem:[%s206 + $0x4] sm:$0xf]
      %v478 = vld [vmem:[%s206 + $0x8] sm:$0xf]
      %v479 = vld [vmem:[%s206 + $0xc] sm:$0xf]
      %v480 = vld [vmem:[%s206 + $0x10] sm:$0xf]
      %v481 = vld [vmem:[%s206 + $0x14] sm:$0xf]
      %v482 = vld [vmem:[%s206 + $0x18] sm:$0xf]
      %v483 = vld [vmem:[%s206 + $0x1c] sm:$0xf]
      %v484 = vld [vmem:[%s206 + $0x20] sm:$0xf]
      %v485 = vld [vmem:[%s206 + $0x24] sm:$0x1]
      %s486 = scalar_lea.vmem %s210, 4
      %v487 = vld [vmem:[%s486] sm:$0x3]
      %v498 = vunpack.c.l.b16 %v476
      %v499 = vunpack.c.l.b16 %v477
      %v500 = vunpack.c.l.b16 %v478
      %v501 = vunpack.c.l.b16 %v479
      %v502 = vunpack.c.l.b16 %v480
      %v503 = vunpack.c.l.b16 %v481
      %v504 = vunpack.c.l.b16 %v482
      %v505 = vunpack.c.l.b16 %v483
      %v506 = vunpack.c.l.b16 %v484
      %v507 = vunpack.c.l.b16 %v485
      %v508 = vpack.c.b16 %v499, %v498
      %v509 = vpack.c.b16 %v501, %v500
      %v510 = vpack.c.b16 %v503, %v502
      %v511 = vpack.c.b16 %v505, %v504
      %v512 = vpack.c.b16 %v507, %v506
      %vm513 = vsmask.f32 7424
      %v515 = vshrl.u32 %v508, 16
      %v517 = vshll.u32 %v508, 16
      %v519 = vrot.slane %v517, 1
      %v520 = vor.u32 %v515, %v519
      %v522 = vshll.u32 %v509, 16
      %v524 = vrot.slane %v522, 1
      %v525 = vsel %vm513, %v520, %v524
      %v526 = vshrl.u32 %v509, 16
      %v528 = vor.u32 %v526, %v524
      %v530 = vshll.u32 %v510, 16
      %v532 = vrot.slane %v530, 1
      %v533 = vsel %vm513, %v528, %v532
      %v534 = vshrl.u32 %v510, 16
      %v536 = vor.u32 %v534, %v532
      %v538 = vshll.u32 %v511, 16
      %v540 = vrot.slane %v538, 1
      %v541 = vsel %vm513, %v536, %v540
      %v542 = vshrl.u32 %v511, 16
      %v544 = vor.u32 %v542, %v540
      %v546 = vshll.u32 %v512, 16
      %v548 = vrot.slane %v546, 1
      %v549 = vsel %vm513, %v544, %v548
      %v550 = vshrl.u32 %v512, 16
      %v552 = vor.u32 %v550, %v548
      %v554 = vsel %vm268, %v525, 0
      %v557 = vsel %vm268, %v533, 0
      %v560 = vsel %vm268, %v541, 0
      %v563 = vsel %vm268, %v549, 0
      %v566 = vsel %vm268, %v552, 0
      %v569 = vand.u32 %v487, %v287
      %571 = vmatprep.subr.bf16.mxu0 0
      %572 = vmatpush1.bf16.msra.mxu0 %v569
      %573 = vmatprep.subr.bf16.mxu0 0
      %574 = vmatpush1.bf16.msra.mxu0 0
      %575 = vmatprep.subr.bf16.mxu0 0
      %576 = vmatpush1.bf16.msra.mxu0 0
      %577 = vmatprep.subr.bf16.mxu0 0
      %578 = vmatpush1.bf16.msra.mxu0 0
      %579 = vmatprep.subr.bf16.mxu0 0
      %580 = vmatpush1.bf16.msra.mxu0 0
      %581 = vmatprep.subr.bf16.mxu0 0
      %582 = vmatpush1.bf16.msra.mxu0 0
      %583 = vmatprep.subr.bf16.mxu0 0
      %584 = vmatpush1.bf16.msra.mxu0 0
      %585 = vmatprep.subr.bf16.mxu0 0
      %586 = vmatpush1.bf16.msra.mxu0 0
      %587 = vmatprep.subr.bf16.mxu0 0
      %588 = vmatpush1.bf16.msra.mxu0 0
      %589 = vmatprep.subr.bf16.mxu0 0
      %590 = vmatpush1.bf16.msra.mxu0 0
      %591 = vmatprep.subr.bf16.mxu0 0
      %592 = vmatpush1.bf16.msra.mxu0 0
      %593 = vmatprep.subr.bf16.mxu0 0
      %594 = vmatpush1.bf16.msra.mxu0 0
      %595 = vmatprep.subr.bf16.mxu0 0
      %596 = vmatpush1.bf16.msra.mxu0 0
      %597 = vmatprep.subr.bf16.mxu0 0
      %598 = vmatpush1.bf16.msra.mxu0 0
      %599 = vmatprep.subr.bf16.mxu0 0
      %600 = vmatpush1.bf16.msra.mxu0 0
      %601 = vmatprep.subr.bf16.mxu0 0
      %602 = vmatpush1.bf16.msra.mxu0 0
      %603 = vmatprep.mubr.bf16.mxu0 0
      %604 = vmatmul.mubr.bf16.gmra.mrb[0].mxu0 %v554
      %v605 = vpop.f32.mrb[0].mxu0
      %v606 = vadd.f32 0.0, %v605
      %v607 = vpop.f32.mrb[0].mxu0
      %v608 = vpop.f32.mrb[0].mxu0
      %v609 = vadd.f32 0.0, %v608
      %v610 = vpop.f32.mrb[0].mxu0
      %611 = vmatprep.mubr.bf16.mxu0 0
      %612 = vmatmul.mubr.bf16.gmra.mrb[0].mxu0 %v557
      %v613 = vpop.f32.mrb[0].mxu0
      %v614 = vadd.f32 0.0, %v613
      %v615 = vpop.f32.mrb[0].mxu0
      %v616 = vpop.f32.mrb[0].mxu0
      %v617 = vadd.f32 0.0, %v616
      %v618 = vpop.f32.mrb[0].mxu0
      %619 = vmatprep.mubr.bf16.mxu0 0
      %620 = vmatmul.mubr.bf16.gmra.mrb[0].mxu0 %v560
      %v621 = vpop.f32.mrb[0].mxu0
      %v622 = vadd.f32 0.0, %v621
      %v623 = vpop.f32.mrb[0].mxu0
      %v624 = vpop.f32.mrb[0].mxu0
      %v625 = vadd.f32 0.0, %v624
      %v626 = vpop.f32.mrb[0].mxu0
      %627 = vmatprep.mubr.bf16.mxu0 0
      %628 = vmatmul.mubr.bf16.gmra.mrb[0].mxu0 %v563
      %v629 = vpop.f32.mrb[0].mxu0
      %v630 = vadd.f32 0.0, %v629
      %v631 = vpop.f32.mrb[0].mxu0
      %v632 = vpop.f32.mrb[0].mxu0
      %v633 = vadd.f32 0.0, %v632
      %v634 = vpop.f32.mrb[0].mxu0
      %635 = vmatprep.mubr.bf16.mxu0 0
      %636 = vmatmul.mubr.bf16.gmra.mrb[0].mxu0 %v566
      %v637 = vpop.f32.mrb[0].mxu0
      %v638 = vadd.f32 0.0, %v637
      %v639 = vpop.f32.mrb[0].mxu0
      %v640 = vpop.f32.mrb[0].mxu0
      %v641 = vpop.f32.mrb[0].mxu0
      %642 = vdwg.mxu0
      %v643 = vadd.f32 %v439, %v606
      %v644 = vadd.f32 %v442, %v609
      %v645 = vadd.f32 %v447, %v614
      %v646 = vadd.f32 %v450, %v617
      %v647 = vadd.f32 %v455, %v622
      %v648 = vadd.f32 %v458, %v625
      %v649 = vadd.f32 %v463, %v630
      %v650 = vadd.f32 %v466, %v633
      %v651 = vadd.f32 %v471, %v638
      %s652 = scalar_lea.vmem %s206, 88
      %v653 = vld [vmem:[%s652] sm:$0xf]
      %v654 = vld [vmem:[%s652 + $0x4] sm:$0xf]
      %v655 = vld [vmem:[%s652 + $0x8] sm:$0xf]
      %v656 = vld [vmem:[%s652 + $0xc] sm:$0xf]
      %v657 = vld [vmem:[%s652 + $0x10] sm:$0xf]
      %v658 = vld [vmem:[%s652 + $0x14] sm:$0xf]
      %v659 = vld [vmem:[%s652 + $0x18] sm:$0xf]
      %v660 = vld [vmem:[%s652 + $0x1c] sm:$0xf]
      %v661 = vld [vmem:[%s652 + $0x20] sm:$0xf]
      %s662 = scalar_lea.vmem %s210, 6
      %v663 = vld [vmem:[%s662] sm:$0x3]
      %v673 = vunpack.c.l.b16 %v653
      %v674 = vunpack.c.l.b16 %v654
      %v675 = vunpack.c.l.b16 %v655
      %v676 = vunpack.c.l.b16 %v656
      %v677 = vunpack.c.l.b16 %v657
      %v678 = vunpack.c.l.b16 %v658
      %v679 = vunpack.c.l.b16 %v659
      %v680 = vunpack.c.l.b16 %v660
      %v681 = vunpack.c.l.b16 %v661
      %v682 = vpack.c.b16 %v674, %v673
      %v683 = vpack.c.b16 %v676, %v675
      %v684 = vpack.c.b16 %v678, %v677
      %v685 = vpack.c.b16 %v680, %v679
      %v686 = vpack.c.b16 %v681, %v681
      %v688 = vsel %vm268, %v682, 0
      %v691 = vsel %vm268, %v683, 0
      %v694 = vsel %vm268, %v684, 0
      %v697 = vsel %vm268, %v685, 0
      %v700 = vsel %vm268, %v686, 0
      %v703 = vand.u32 %v663, %v287
      %705 = vmatprep.subr.bf16.mxu0 0
      %706 = vmatpush1.bf16.msra.mxu0 %v703
      %707 = vmatprep.subr.bf16.mxu0 0
      %708 = vmatpush1.bf16.msra.mxu0 0
      %709 = vmatprep.subr.bf16.mxu0 0
      %710 = vmatpush1.bf16.msra.mxu0 0
      %711 = vmatprep.subr.bf16.mxu0 0
      %712 = vmatpush1.bf16.msra.mxu0 0
      %713 = vmatprep.subr.bf16.mxu0 0
      %714 = vmatpush1.bf16.msra.mxu0 0
      %715 = vmatprep.subr.bf16.mxu0 0
      %716 = vmatpush1.bf16.msra.mxu0 0
      %717 = vmatprep.subr.bf16.mxu0 0
      %718 = vmatpush1.bf16.msra.mxu0 0
      %719 = vmatprep.subr.bf16.mxu0 0
      %720 = vmatpush1.bf16.msra.mxu0 0
      %721 = vmatprep.subr.bf16.mxu0 0
      %722 = vmatpush1.bf16.msra.mxu0 0
      %723 = vmatprep.subr.bf16.mxu0 0
      %724 = vmatpush1.bf16.msra.mxu0 0
      %725 = vmatprep.subr.bf16.mxu0 0
      %726 = vmatpush1.bf16.msra.mxu0 0
      %727 = vmatprep.subr.bf16.mxu0 0
      %728 = vmatpush1.bf16.msra.mxu0 0
      %729 = vmatprep.subr.bf16.mxu0 0
      %730 = vmatpush1.bf16.msra.mxu0 0
      %731 = vmatprep.subr.bf16.mxu0 0
      %732 = vmatpush1.bf16.msra.mxu0 0
      %733 = vmatprep.subr.bf16.mxu0 0
      %734 = vmatpush1.bf16.msra.mxu0 0
      %735 = vmatprep.subr.bf16.mxu0 0
      %736 = vmatpush1.bf16.msra.mxu0 0
      %737 = vmatprep.mubr.bf16.mxu0 0
      %738 = vmatmul.mubr.bf16.gmra.mrb[0].mxu0 %v688
      %v739 = vpop.f32.mrb[0].mxu0
      %v740 = vadd.f32 0.0, %v739
      %v741 = vpop.f32.mrb[0].mxu0
      %v742 = vpop.f32.mrb[0].mxu0
      %v743 = vadd.f32 0.0, %v742
      %v744 = vpop.f32.mrb[0].mxu0
      %745 = vmatprep.mubr.bf16.mxu0 0
      %746 = vmatmul.mubr.bf16.gmra.mrb[0].mxu0 %v691
      %v747 = vpop.f32.mrb[0].mxu0
      %v748 = vadd.f32 0.0, %v747
      %v749 = vpop.f32.mrb[0].mxu0
      %v750 = vpop.f32.mrb[0].mxu0
      %v751 = vadd.f32 0.0, %v750
      %v752 = vpop.f32.mrb[0].mxu0
      %753 = vmatprep.mubr.bf16.mxu0 0
      %754 = vmatmul.mubr.bf16.gmra.mrb[0].mxu0 %v694
      %v755 = vpop.f32.mrb[0].mxu0
      %v756 = vadd.f32 0.0, %v755
      %v757 = vpop.f32.mrb[0].mxu0
      %v758 = vpop.f32.mrb[0].mxu0
      %v759 = vadd.f32 0.0, %v758
      %v760 = vpop.f32.mrb[0].mxu0
      %761 = vmatprep.mubr.bf16.mxu0 0
      %762 = vmatmul.mubr.bf16.gmra.mrb[0].mxu0 %v697
      %v763 = vpop.f32.mrb[0].mxu0
      %v764 = vadd.f32 0.0, %v763
      %v765 = vpop.f32.mrb[0].mxu0
      %v766 = vpop.f32.mrb[0].mxu0
      %v767 = vadd.f32 0.0, %v766
      %v768 = vpop.f32.mrb[0].mxu0
      %769 = vmatprep.mubr.bf16.mxu0 0
      %770 = vmatmul.mubr.bf16.gmra.mrb[0].mxu0 %v700
      %v771 = vpop.f32.mrb[0].mxu0
      %v772 = vadd.f32 0.0, %v771
      %v773 = vpop.f32.mrb[0].mxu0
      %v774 = vpop.f32.mrb[0].mxu0
      %v775 = vpop.f32.mrb[0].mxu0
      %776 = vdwg.mxu0
      %v777 = vadd.f32 %v643, %v740
      %v778 = vadd.f32 %v644, %v743
      %v779 = vadd.f32 %v645, %v748
      %v780 = vadd.f32 %v646, %v751
      %v781 = vadd.f32 %v647, %v756
      %v782 = vadd.f32 %v648, %v759
      %v783 = vadd.f32 %v649, %v764
      %v784 = vadd.f32 %v650, %v767
      %v785 = vadd.f32 %v651, %v772
      %s786 = scalar_lea.vmem %s206, 132
      %v787 = vld [vmem:[%s786] sm:$0xf]
      %v788 = vld [vmem:[%s786 + $0x4] sm:$0xf]
      %v789 = vld [vmem:[%s786 + $0x8] sm:$0xf]
      %v790 = vld [vmem:[%s786 + $0xc] sm:$0xf]
      %v791 = vld [vmem:[%s786 + $0x10] sm:$0xf]
      %v792 = vld [vmem:[%s786 + $0x14] sm:$0xf]
      %v793 = vld [vmem:[%s786 + $0x18] sm:$0xf]
      %v794 = vld [vmem:[%s786 + $0x1c] sm:$0xf]
      %v795 = vld [vmem:[%s786 + $0x20] sm:$0xf]
      %s796 = scalar_lea.vmem %s210, 8
      %v797 = vld [vmem:[%s796] sm:$0x3]
      %v807 = vunpack.c.l.b16 %v787
      %v808 = vunpack.c.l.b16 %v788
      %v809 = vunpack.c.l.b16 %v789
      %v810 = vunpack.c.l.b16 %v790
      %v811 = vunpack.c.l.b16 %v791
      %v812 = vunpack.c.l.b16 %v792
      %v813 = vunpack.c.l.b16 %v793
      %v814 = vunpack.c.l.b16 %v794
      %v815 = vunpack.c.l.b16 %v795
      %v816 = vpack.c.b16 %v808, %v807
      %v817 = vpack.c.b16 %v810, %v809
      %v818 = vpack.c.b16 %v812, %v811
      %v819 = vpack.c.b16 %v814, %v813
      %v820 = vpack.c.b16 %v815, %v815
      %v822 = vsel %vm268, %v816, 0
      %v825 = vsel %vm268, %v817, 0
      %v828 = vsel %vm268, %v818, 0
      %v831 = vsel %vm268, %v819, 0
      %v834 = vsel %vm268, %v820, 0
      %v837 = vand.u32 %v797, %v287
      %839 = vmatprep.subr.bf16.mxu0 0
      %840 = vmatpush1.bf16.msra.mxu0 %v837
      %841 = vmatprep.subr.bf16.mxu0 0
      %842 = vmatpush1.bf16.msra.mxu0 0
      %843 = vmatprep.subr.bf16.mxu0 0
      %844 = vmatpush1.bf16.msra.mxu0 0
      %845 = vmatprep.subr.bf16.mxu0 0
      %846 = vmatpush1.bf16.msra.mxu0 0
      %847 = vmatprep.subr.bf16.mxu0 0
      %848 = vmatpush1.bf16.msra.mxu0 0
      %849 = vmatprep.subr.bf16.mxu0 0
      %850 = vmatpush1.bf16.msra.mxu0 0
      %851 = vmatprep.subr.bf16.mxu0 0
      %852 = vmatpush1.bf16.msra.mxu0 0
      %853 = vmatprep.subr.bf16.mxu0 0
      %854 = vmatpush1.bf16.msra.mxu0 0
      %855 = vmatprep.subr.bf16.mxu0 0
      %856 = vmatpush1.bf16.msra.mxu0 0
      %857 = vmatprep.subr.bf16.mxu0 0
      %858 = vmatpush1.bf16.msra.mxu0 0
      %859 = vmatprep.subr.bf16.mxu0 0
      %860 = vmatpush1.bf16.msra.mxu0 0
      %861 = vmatprep.subr.bf16.mxu0 0
      %862 = vmatpush1.bf16.msra.mxu0 0
      %863 = vmatprep.subr.bf16.mxu0 0
      %864 = vmatpush1.bf16.msra.mxu0 0
      %865 = vmatprep.subr.bf16.mxu0 0
      %866 = vmatpush1.bf16.msra.mxu0 0
      %867 = vmatprep.subr.bf16.mxu0 0
      %868 = vmatpush1.bf16.msra.mxu0 0
      %869 = vmatprep.subr.bf16.mxu0 0
      %870 = vmatpush1.bf16.msra.mxu0 0
      %871 = vmatprep.mubr.bf16.mxu0 0
      %872 = vmatmul.mubr.bf16.gmra.mrb[0].mxu0 %v822
      %v873 = vpop.f32.mrb[0].mxu0
      %v874 = vadd.f32 0.0, %v873
      %v875 = vpop.f32.mrb[0].mxu0
      %v876 = vpop.f32.mrb[0].mxu0
      %v877 = vadd.f32 0.0, %v876
      %v878 = vpop.f32.mrb[0].mxu0
      %879 = vmatprep.mubr.bf16.mxu0 0
      %880 = vmatmul.mubr.bf16.gmra.mrb[0].mxu0 %v825
      %v881 = vpop.f32.mrb[0].mxu0
      %v882 = vadd.f32 0.0, %v881
      %v883 = vpop.f32.mrb[0].mxu0
      %v884 = vpop.f32.mrb[0].mxu0
      %v885 = vadd.f32 0.0, %v884
      %v886 = vpop.f32.mrb[0].mxu0
      %887 = vmatprep.mubr.bf16.mxu0 0
      %888 = vmatmul.mubr.bf16.gmra.mrb[0].mxu0 %v828
      %v889 = vpop.f32.mrb[0].mxu0
      %v890 = vadd.f32 0.0, %v889
      %v891 = vpop.f32.mrb[0].mxu0
      %v892 = vpop.f32.mrb[0].mxu0
      %v893 = vadd.f32 0.0, %v892
      %v894 = vpop.f32.mrb[0].mxu0
      %895 = vmatprep.mubr.bf16.mxu0 0
      %896 = vmatmul.mubr.bf16.gmra.mrb[0].mxu0 %v831
      %v897 = vpop.f32.mrb[0].mxu0
      %v898 = vadd.f32 0.0, %v897
      %v899 = vpop.f32.mrb[0].mxu0
      %v900 = vpop.f32.mrb[0].mxu0
      %v901 = vadd.f32 0.0, %v900
      %v902 = vpop.f32.mrb[0].mxu0
      %903 = vmatprep.mubr.bf16.mxu0 0
      %904 = vmatmul.mubr.bf16.gmra.mrb[0].mxu0 %v834
      %v905 = vpop.f32.mrb[0].mxu0
      %v906 = vadd.f32 0.0, %v905
      %v907 = vpop.f32.mrb[0].mxu0
      %v908 = vpop.f32.mrb[0].mxu0
      %v909 = vpop.f32.mrb[0].mxu0
      %910 = vdwg.mxu0
      %v911 = vadd.f32 %v777, %v874
      %v912 = vadd.f32 %v778, %v877
      %v913 = vadd.f32 %v779, %v882
      %v914 = vadd.f32 %v780, %v885
      %v915 = vadd.f32 %v781, %v890
      %v916 = vadd.f32 %v782, %v893
      %v917 = vadd.f32 %v783, %v898
      %v918 = vadd.f32 %v784, %v901
      %v919 = vadd.f32 %v785, %v906
      %v920 = vld [vmem:[%s652] sm:$0xf]
      %v921 = vld [vmem:[%s652 + $0x4] sm:$0xf]
      %v922 = vld [vmem:[%s652 + $0x8] sm:$0xf]
      %v923 = vld [vmem:[%s652 + $0xc] sm:$0xf]
      %v924 = vld [vmem:[%s652 + $0x10] sm:$0xf]
      %v925 = vld [vmem:[%s652 + $0x14] sm:$0xf]
      %v926 = vld [vmem:[%s652 + $0x18] sm:$0xf]
      %v927 = vld [vmem:[%s652 + $0x1c] sm:$0xf]
      %v928 = vld [vmem:[%s652 + $0x20] sm:$0xf]
      %v929 = vld [vmem:[%s652 + $0x24] sm:$0x1]
      %s930 = scalar_lea.vmem %s210, 10
      %v931 = vld [vmem:[%s930] sm:$0x3]
      %v942 = vunpack.c.l.b16 %v920
      %v943 = vunpack.c.l.b16 %v921
      %v944 = vunpack.c.l.b16 %v922
      %v945 = vunpack.c.l.b16 %v923
      %v946 = vunpack.c.l.b16 %v924
      %v947 = vunpack.c.l.b16 %v925
      %v948 = vunpack.c.l.b16 %v926
      %v949 = vunpack.c.l.b16 %v927
      %v950 = vunpack.c.l.b16 %v928
      %v951 = vunpack.c.l.b16 %v929
      %v952 = vpack.c.b16 %v943, %v942
      %v953 = vpack.c.b16 %v945, %v944
      %v954 = vpack.c.b16 %v947, %v946
      %v955 = vpack.c.b16 %v949, %v948
      %v956 = vpack.c.b16 %v951, %v950
      %v958 = vshrl.u32 %v952, 16
      %v960 = vshll.u32 %v952, 16
      %v962 = vrot.slane %v960, 1
      %v963 = vor.u32 %v958, %v962
      %v965 = vshll.u32 %v953, 16
      %v967 = vrot.slane %v965, 1
      %v968 = vsel %vm513, %v963, %v967
      %v969 = vshrl.u32 %v953, 16
      %v971 = vor.u32 %v969, %v967
      %v973 = vshll.u32 %v954, 16
      %v975 = vrot.slane %v973, 1
      %v976 = vsel %vm513, %v971, %v975
      %v977 = vshrl.u32 %v954, 16
      %v979 = vor.u32 %v977, %v975
      %v981 = vshll.u32 %v955, 16
      %v983 = vrot.slane %v981, 1
      %v984 = vsel %vm513, %v979, %v983
      %v985 = vshrl.u32 %v955, 16
      %v987 = vor.u32 %v985, %v983
      %v989 = vshll.u32 %v956, 16
      %v991 = vrot.slane %v989, 1
      %v992 = vsel %vm513, %v987, %v991
      %v993 = vshrl.u32 %v956, 16
      %v995 = vor.u32 %v993, %v991
      %v997 = vsel %vm268, %v968, 0
      %v1000 = vsel %vm268, %v976, 0
      %v1003 = vsel %vm268, %v984, 0
      %v1006 = vsel %vm268, %v992, 0
      %v1009 = vsel %vm268, %v995, 0
      %v1012 = vand.u32 %v931, %v287
      %1014 = vmatprep.subr.bf16.mxu0 0
      %1015 = vmatpush1.bf16.msra.mxu0 %v1012
      %1016 = vmatprep.subr.bf16.mxu0 0
      %1017 = vmatpush1.bf16.msra.mxu0 0
      %1018 = vmatprep.subr.bf16.mxu0 0
      %1019 = vmatpush1.bf16.msra.mxu0 0
      %1020 = vmatprep.subr.bf16.mxu0 0
      %1021 = vmatpush1.bf16.msra.mxu0 0
      %1022 = vmatprep.subr.bf16.mxu0 0
      %1023 = vmatpush1.bf16.msra.mxu0 0
      %1024 = vmatprep.subr.bf16.mxu0 0
      %1025 = vmatpush1.bf16.msra.mxu0 0
      %1026 = vmatprep.subr.bf16.mxu0 0
      %1027 = vmatpush1.bf16.msra.mxu0 0
      %1028 = vmatprep.subr.bf16.mxu0 0
      %1029 = vmatpush1.bf16.msra.mxu0 0
      %1030 = vmatprep.subr.bf16.mxu0 0
      %1031 = vmatpush1.bf16.msra.mxu0 0
      %1032 = vmatprep.subr.bf16.mxu0 0
      %1033 = vmatpush1.bf16.msra.mxu0 0
      %1034 = vmatprep.subr.bf16.mxu0 0
      %1035 = vmatpush1.bf16.msra.mxu0 0
      %1036 = vmatprep.subr.bf16.mxu0 0
      %1037 = vmatpush1.bf16.msra.mxu0 0
      %1038 = vmatprep.subr.bf16.mxu0 0
      %1039 = vmatpush1.bf16.msra.mxu0 0
      %1040 = vmatprep.subr.bf16.mxu0 0
      %1041 = vmatpush1.bf16.msra.mxu0 0
      %1042 = vmatprep.subr.bf16.mxu0 0
      %1043 = vmatpush1.bf16.msra.mxu0 0
      %1044 = vmatprep.subr.bf16.mxu0 0
      %1045 = vmatpush1.bf16.msra.mxu0 0
      %1046 = vmatprep.mubr.bf16.mxu0 0
      %1047 = vmatmul.mubr.bf16.gmra.mrb[0].mxu0 %v997
      %v1048 = vpop.f32.mrb[0].mxu0
      %v1049 = vadd.f32 0.0, %v1048
      %v1050 = vpop.f32.mrb[0].mxu0
      %v1051 = vpop.f32.mrb[0].mxu0
      %v1052 = vadd.f32 0.0, %v1051
      %v1053 = vpop.f32.mrb[0].mxu0
      %1054 = vmatprep.mubr.bf16.mxu0 0
      %1055 = vmatmul.mubr.bf16.gmra.mrb[0].mxu0 %v1000
      %v1056 = vpop.f32.mrb[0].mxu0
      %v1057 = vadd.f32 0.0, %v1056
      %v1058 = vpop.f32.mrb[0].mxu0
      %v1059 = vpop.f32.mrb[0].mxu0
      %v1060 = vadd.f32 0.0, %v1059
      %v1061 = vpop.f32.mrb[0].mxu0
      %1062 = vmatprep.mubr.bf16.mxu0 0
      %1063 = vmatmul.mubr.bf16.gmra.mrb[0].mxu0 %v1003
      %v1064 = vpop.f32.mrb[0].mxu0
      %v1065 = vadd.f32 0.0, %v1064
      %v1066 = vpop.f32.mrb[0].mxu0
      %v1067 = vpop.f32.mrb[0].mxu0
      %v1068 = vadd.f32 0.0, %v1067
      %v1069 = vpop.f32.mrb[0].mxu0
      %1070 = vmatprep.mubr.bf16.mxu0 0
      %1071 = vmatmul.mubr.bf16.gmra.mrb[0].mxu0 %v1006
      %v1072 = vpop.f32.mrb[0].mxu0
      %v1073 = vadd.f32 0.0, %v1072
      %v1074 = vpop.f32.mrb[0].mxu0
      %v1075 = vpop.f32.mrb[0].mxu0
      %v1076 = vadd.f32 0.0, %v1075
      %v1077 = vpop.f32.mrb[0].mxu0
      %1078 = vmatprep.mubr.bf16.mxu0 0
      %1079 = vmatmul.mubr.bf16.gmra.mrb[0].mxu0 %v1009
      %v1080 = vpop.f32.mrb[0].mxu0
      %v1081 = vadd.f32 0.0, %v1080
      %v1082 = vpop.f32.mrb[0].mxu0
      %v1083 = vpop.f32.mrb[0].mxu0
      %v1084 = vpop.f32.mrb[0].mxu0
      %1085 = vdwg.mxu0
      %v1086 = vadd.f32 %v911, %v1049
      %v1087 = vadd.f32 %v912, %v1052
      %v1088 = vadd.f32 %v913, %v1057
      %v1089 = vadd.f32 %v914, %v1060
      %v1090 = vadd.f32 %v915, %v1065
      %v1091 = vadd.f32 %v916, %v1068
      %v1092 = vadd.f32 %v917, %v1073
      %v1093 = vadd.f32 %v918, %v1076
      %v1094 = vadd.f32 %v919, %v1081
      %v1095 = vld [vmem:[%s206 + $0x4] sm:$0xf]
      %v1096 = vld [vmem:[%s206 + $0x8] sm:$0xf]
      %v1097 = vld [vmem:[%s206 + $0xc] sm:$0xf]
      %v1098 = vld [vmem:[%s206 + $0x10] sm:$0xf]
      %v1099 = vld [vmem:[%s206 + $0x14] sm:$0xf]
      %v1100 = vld [vmem:[%s206 + $0x18] sm:$0xf]
      %v1101 = vld [vmem:[%s206 + $0x1c] sm:$0xf]
      %v1102 = vld [vmem:[%s206 + $0x20] sm:$0xf]
      %v1103 = vld [vmem:[%s206 + $0x24] sm:$0xf]
      %v1104 = vld [vmem:[%s206 + $0x28] sm:$0x1]
      %s1105 = scalar_lea.vmem %s210, 12
      %v1106 = vld [vmem:[%s1105] sm:$0x3]
      %v1117 = vunpack.c.l.b16 %v1095
      %v1118 = vunpack.c.l.b16 %v1096
      %v1119 = vunpack.c.l.b16 %v1097
      %v1120 = vunpack.c.l.b16 %v1098
      %v1121 = vunpack.c.l.b16 %v1099
      %v1122 = vunpack.c.l.b16 %v1100
      %v1123 = vunpack.c.l.b16 %v1101
      %v1124 = vunpack.c.l.b16 %v1102
      %v1125 = vunpack.c.l.b16 %v1103
      %v1126 = vunpack.c.l.b16 %v1104
      %v1127 = vpack.c.b16 %v1118, %v1117
      %v1128 = vpack.c.b16 %v1120, %v1119
      %v1129 = vpack.c.b16 %v1122, %v1121
      %v1130 = vpack.c.b16 %v1124, %v1123
      %v1131 = vpack.c.b16 %v1126, %v1125
      %v1133 = vshrl.u32 %v1127, 16
      %v1135 = vshll.u32 %v1127, 16
      %v1137 = vrot.slane %v1135, 1
      %v1138 = vor.u32 %v1133, %v1137
      %v1140 = vshll.u32 %v1128, 16
      %v1142 = vrot.slane %v1140, 1
      %v1143 = vsel %vm513, %v1138, %v1142
      %v1144 = vshrl.u32 %v1128, 16
      %v1146 = vor.u32 %v1144, %v1142
      %v1148 = vshll.u32 %v1129, 16
      %v1150 = vrot.slane %v1148, 1
      %v1151 = vsel %vm513, %v1146, %v1150
      %v1152 = vshrl.u32 %v1129, 16
      %v1154 = vor.u32 %v1152, %v1150
      %v1156 = vshll.u32 %v1130, 16
      %v1158 = vrot.slane %v1156, 1
      %v1159 = vsel %vm513, %v1154, %v1158
      %v1160 = vshrl.u32 %v1130, 16
      %v1162 = vor.u32 %v1160, %v1158
      %v1164 = vshll.u32 %v1131, 16
      %v1166 = vrot.slane %v1164, 1
      %v1167 = vsel %vm513, %v1162, %v1166
      %v1168 = vshrl.u32 %v1131, 16
      %v1170 = vor.u32 %v1168, %v1166
      %v1172 = vsel %vm268, %v1143, 0
      %v1175 = vsel %vm268, %v1151, 0
      %v1178 = vsel %vm268, %v1159, 0
      %v1181 = vsel %vm268, %v1167, 0
      %v1184 = vsel %vm268, %v1170, 0
      %v1187 = vand.u32 %v1106, %v287
      %1189 = vmatprep.subr.bf16.mxu0 0
      %1190 = vmatpush1.bf16.msra.mxu0 %v1187
      %1191 = vmatprep.subr.bf16.mxu0 0
      %1192 = vmatpush1.bf16.msra.mxu0 0
      %1193 = vmatprep.subr.bf16.mxu0 0
      %1194 = vmatpush1.bf16.msra.mxu0 0
      %1195 = vmatprep.subr.bf16.mxu0 0
      %1196 = vmatpush1.bf16.msra.mxu0 0
      %1197 = vmatprep.subr.bf16.mxu0 0
      %1198 = vmatpush1.bf16.msra.mxu0 0
      %1199 = vmatprep.subr.bf16.mxu0 0
      %1200 = vmatpush1.bf16.msra.mxu0 0
      %1201 = vmatprep.subr.bf16.mxu0 0
      %1202 = vmatpush1.bf16.msra.mxu0 0
      %1203 = vmatprep.subr.bf16.mxu0 0
      %1204 = vmatpush1.bf16.msra.mxu0 0
      %1205 = vmatprep.subr.bf16.mxu0 0
      %1206 = vmatpush1.bf16.msra.mxu0 0
      %1207 = vmatprep.subr.bf16.mxu0 0
      %1208 = vmatpush1.bf16.msra.mxu0 0
      %1209 = vmatprep.subr.bf16.mxu0 0
      %1210 = vmatpush1.bf16.msra.mxu0 0
      %1211 = vmatprep.subr.bf16.mxu0 0
      %1212 = vmatpush1.bf16.msra.mxu0 0
      %1213 = vmatprep.subr.bf16.mxu0 0
      %1214 = vmatpush1.bf16.msra.mxu0 0
      %1215 = vmatprep.subr.bf16.mxu0 0
      %1216 = vmatpush1.bf16.msra.mxu0 0
      %1217 = vmatprep.subr.bf16.mxu0 0
      %1218 = vmatpush1.bf16.msra.mxu0 0
      %1219 = vmatprep.subr.bf16.mxu0 0
      %1220 = vmatpush1.bf16.msra.mxu0 0
      %1221 = vmatprep.mubr.bf16.mxu0 0
      %1222 = vmatmul.mubr.bf16.gmra.mrb[0].mxu0 %v1172
      %v1223 = vpop.f32.mrb[0].mxu0
      %v1224 = vadd.f32 0.0, %v1223
      %v1225 = vpop.f32.mrb[0].mxu0
      %v1226 = vpop.f32.mrb[0].mxu0
      %v1227 = vadd.f32 0.0, %v1226
      %v1228 = vpop.f32.mrb[0].mxu0
      %1229 = vmatprep.mubr.bf16.mxu0 0
      %1230 = vmatmul.mubr.bf16.gmra.mrb[0].mxu0 %v1175
      %v1231 = vpop.f32.mrb[0].mxu0
      %v1232 = vadd.f32 0.0, %v1231
      %v1233 = vpop.f32.mrb[0].mxu0
      %v1234 = vpop.f32.mrb[0].mxu0
      %v1235 = vadd.f32 0.0, %v1234
      %v1236 = vpop.f32.mrb[0].mxu0
      %1237 = vmatprep.mubr.bf16.mxu0 0
      %1238 = vmatmul.mubr.bf16.gmra.mrb[0].mxu0 %v1178
      %v1239 = vpop.f32.mrb[0].mxu0
      %v1240 = vadd.f32 0.0, %v1239
      %v1241 = vpop.f32.mrb[0].mxu0
      %v1242 = vpop.f32.mrb[0].mxu0
      %v1243 = vadd.f32 0.0, %v1242
      %v1244 = vpop.f32.mrb[0].mxu0
      %1245 = vmatprep.mubr.bf16.mxu0 0
      %1246 = vmatmul.mubr.bf16.gmra.mrb[0].mxu0 %v1181
      %v1247 = vpop.f32.mrb[0].mxu0
      %v1248 = vadd.f32 0.0, %v1247
      %v1249 = vpop.f32.mrb[0].mxu0
      %v1250 = vpop.f32.mrb[0].mxu0
      %v1251 = vadd.f32 0.0, %v1250
      %v1252 = vpop.f32.mrb[0].mxu0
      %1253 = vmatprep.mubr.bf16.mxu0 0
      %1254 = vmatmul.mubr.bf16.gmra.mrb[0].mxu0 %v1184
      %v1255 = vpop.f32.mrb[0].mxu0
      %v1256 = vadd.f32 0.0, %v1255
      %v1257 = vpop.f32.mrb[0].mxu0
      %v1258 = vpop.f32.mrb[0].mxu0
      %v1259 = vpop.f32.mrb[0].mxu0
      %1260 = vdwg.mxu0
      %v1261 = vadd.f32 %v1086, %v1224
      %v1262 = vadd.f32 %v1087, %v1227
      %v1263 = vadd.f32 %v1088, %v1232
      %v1264 = vadd.f32 %v1089, %v1235
      %v1265 = vadd.f32 %v1090, %v1240
      %v1266 = vadd.f32 %v1091, %v1243
      %v1267 = vadd.f32 %v1092, %v1248
      %v1268 = vadd.f32 %v1093, %v1251
      %v1269 = vadd.f32 %v1094, %v1256
      %v1270 = vld [vmem:[%s233 + $0x4] sm:$0xf]
      %v1271 = vld [vmem:[%s233 + $0x8] sm:$0xf]
      %v1272 = vld [vmem:[%s233 + $0xc] sm:$0xf]
      %v1273 = vld [vmem:[%s233 + $0x10] sm:$0xf]
      %v1274 = vld [vmem:[%s233 + $0x14] sm:$0xf]
      %v1275 = vld [vmem:[%s233 + $0x18] sm:$0xf]
      %v1276 = vld [vmem:[%s233 + $0x1c] sm:$0xf]
      %v1277 = vld [vmem:[%s233 + $0x20] sm:$0xf]
      %v1278 = vld [vmem:[%s233 + $0x24] sm:$0xf]
      %v1279 = vld [vmem:[%s233 + $0x28] sm:$0x1]
      %s1280 = scalar_lea.vmem %s210, 14
      %v1281 = vld [vmem:[%s1280] sm:$0x3]
      %v1292 = vunpack.c.l.b16 %v1270
      %v1293 = vunpack.c.l.b16 %v1271
      %v1294 = vunpack.c.l.b16 %v1272
      %v1295 = vunpack.c.l.b16 %v1273
      %v1296 = vunpack.c.l.b16 %v1274
      %v1297 = vunpack.c.l.b16 %v1275
      %v1298 = vunpack.c.l.b16 %v1276
      %v1299 = vunpack.c.l.b16 %v1277
      %v1300 = vunpack.c.l.b16 %v1278
      %v1301 = vunpack.c.l.b16 %v1279
      %v1302 = vpack.c.b16 %v1293, %v1292
      %v1303 = vpack.c.b16 %v1295, %v1294
      %v1304 = vpack.c.b16 %v1297, %v1296
      %v1305 = vpack.c.b16 %v1299, %v1298
      %v1306 = vpack.c.b16 %v1301, %v1300
      %v1308 = vshrl.u32 %v1302, 16
      %v1310 = vshll.u32 %v1302, 16
      %v1312 = vrot.slane %v1310, 1
      %v1313 = vor.u32 %v1308, %v1312
      %v1315 = vshll.u32 %v1303, 16
      %v1317 = vrot.slane %v1315, 1
      %v1318 = vsel %vm513, %v1313, %v1317
      %v1319 = vshrl.u32 %v1303, 16
      %v1321 = vor.u32 %v1319, %v1317
      %v1323 = vshll.u32 %v1304, 16
      %v1325 = vrot.slane %v1323, 1
      %v1326 = vsel %vm513, %v1321, %v1325
      %v1327 = vshrl.u32 %v1304, 16
      %v1329 = vor.u32 %v1327, %v1325
      %v1331 = vshll.u32 %v1305, 16
      %v1333 = vrot.slane %v1331, 1
      %v1334 = vsel %vm513, %v1329, %v1333
      %v1335 = vshrl.u32 %v1305, 16
      %v1337 = vor.u32 %v1335, %v1333
      %v1339 = vshll.u32 %v1306, 16
      %v1341 = vrot.slane %v1339, 1
      %v1342 = vsel %vm513, %v1337, %v1341
      %v1343 = vshrl.u32 %v1306, 16
      %v1345 = vor.u32 %v1343, %v1341
      %v1347 = vsel %vm268, %v1318, 0
      %v1350 = vsel %vm268, %v1326, 0
      %v1353 = vsel %vm268, %v1334, 0
      %v1356 = vsel %vm268, %v1342, 0
      %v1359 = vsel %vm268, %v1345, 0
      %v1362 = vand.u32 %v1281, %v287
      %1364 = vmatprep.subr.bf16.mxu0 0
      %1365 = vmatpush1.bf16.msra.mxu0 %v1362
      %1366 = vmatprep.subr.bf16.mxu0 0
      %1367 = vmatpush1.bf16.msra.mxu0 0
      %1368 = vmatprep.subr.bf16.mxu0 0
      %1369 = vmatpush1.bf16.msra.mxu0 0
      %1370 = vmatprep.subr.bf16.mxu0 0
      %1371 = vmatpush1.bf16.msra.mxu0 0
      %1372 = vmatprep.subr.bf16.mxu0 0
      %1373 = vmatpush1.bf16.msra.mxu0 0
      %1374 = vmatprep.subr.bf16.mxu0 0
      %1375 = vmatpush1.bf16.msra.mxu0 0
      %1376 = vmatprep.subr.bf16.mxu0 0
      %1377 = vmatpush1.bf16.msra.mxu0 0
      %1378 = vmatprep.subr.bf16.mxu0 0
      %1379 = vmatpush1.bf16.msra.mxu0 0
      %1380 = vmatprep.subr.bf16.mxu0 0
      %1381 = vmatpush1.bf16.msra.mxu0 0
      %1382 = vmatprep.subr.bf16.mxu0 0
      %1383 = vmatpush1.bf16.msra.mxu0 0
      %1384 = vmatprep.subr.bf16.mxu0 0
      %1385 = vmatpush1.bf16.msra.mxu0 0
      %1386 = vmatprep.subr.bf16.mxu0 0
      %1387 = vmatpush1.bf16.msra.mxu0 0
      %1388 = vmatprep.subr.bf16.mxu0 0
      %1389 = vmatpush1.bf16.msra.mxu0 0
      %1390 = vmatprep.subr.bf16.mxu0 0
      %1391 = vmatpush1.bf16.msra.mxu0 0
      %1392 = vmatprep.subr.bf16.mxu0 0
      %1393 = vmatpush1.bf16.msra.mxu0 0
      %1394 = vmatprep.subr.bf16.mxu0 0
      %1395 = vmatpush1.bf16.msra.mxu0 0
      %1396 = vmatprep.mubr.bf16.mxu0 0
      %1397 = vmatmul.mubr.bf16.gmra.mrb[0].mxu0 %v1347
      %v1398 = vpop.f32.mrb[0].mxu0
      %v1399 = vadd.f32 0.0, %v1398
      %v1400 = vpop.f32.mrb[0].mxu0
      %v1401 = vpop.f32.mrb[0].mxu0
      %v1402 = vadd.f32 0.0, %v1401
      %v1403 = vpop.f32.mrb[0].mxu0
      %1404 = vmatprep.mubr.bf16.mxu0 0
      %1405 = vmatmul.mubr.bf16.gmra.mrb[0].mxu0 %v1350
      %v1406 = vpop.f32.mrb[0].mxu0
      %v1407 = vadd.f32 0.0, %v1406
      %v1408 = vpop.f32.mrb[0].mxu0
      %v1409 = vpop.f32.mrb[0].mxu0
      %v1410 = vadd.f32 0.0, %v1409
      %v1411 = vpop.f32.mrb[0].mxu0
      %1412 = vmatprep.mubr.bf16.mxu0 0
      %1413 = vmatmul.mubr.bf16.gmra.mrb[0].mxu0 %v1353
      %v1414 = vpop.f32.mrb[0].mxu0
      %v1415 = vadd.f32 0.0, %v1414
      %v1416 = vpop.f32.mrb[0].mxu0
      %v1417 = vpop.f32.mrb[0].mxu0
      %v1418 = vadd.f32 0.0, %v1417
      %v1419 = vpop.f32.mrb[0].mxu0
      %1420 = vmatprep.mubr.bf16.mxu0 0
      %1421 = vmatmul.mubr.bf16.gmra.mrb[0].mxu0 %v1356
      %v1422 = vpop.f32.mrb[0].mxu0
      %v1423 = vadd.f32 0.0, %v1422
      %v1424 = vpop.f32.mrb[0].mxu0
      %v1425 = vpop.f32.mrb[0].mxu0
      %v1426 = vadd.f32 0.0, %v1425
      %v1427 = vpop.f32.mrb[0].mxu0
      %1428 = vmatprep.mubr.bf16.mxu0 0
      %1429 = vmatmul.mubr.bf16.gmra.mrb[0].mxu0 %v1359
      %v1430 = vpop.f32.mrb[0].mxu0
      %v1431 = vadd.f32 0.0, %v1430
      %v1432 = vpop.f32.mrb[0].mxu0
      %v1433 = vpop.f32.mrb[0].mxu0
      %v1434 = vpop.f32.mrb[0].mxu0
      %1435 = vdwg.mxu0
      %v1436 = vadd.f32 %v1261, %v1399
      %v1437 = vadd.f32 %v1262, %v1402
      %v1438 = vadd.f32 %v1263, %v1407
      %v1439 = vadd.f32 %v1264, %v1410
      %v1440 = vadd.f32 %v1265, %v1415
      %v1441 = vadd.f32 %v1266, %v1418
      %v1442 = vadd.f32 %v1267, %v1423
      %v1443 = vadd.f32 %v1268, %v1426
      %v1444 = vadd.f32 %v1269, %v1431
      %v1445 = vld [vmem:[%s206 + $0x4] sm:$0xe]
      %s1446 = scalar_lea.vmem %s210, 16
      %v1447 = vld [vmem:[%s1446] sm:$0x3]
      %v1449 = vunpack.c.l.b16 %v1445
      %v1450 = vpack.c.b16 %v1118, %v1449
      %vm1451 = vcmask 1046528
      %v1452 = vrot.slane %v1450, 1
      %v1453 = vrot.slane %v1128, 1
      %v1454 = vsel %vm1451, %v1452, %v1453
      %v1455 = vrot.slane %v1129, 1
      %v1456 = vsel %vm1451, %v1453, %v1455
      %v1457 = vrot.slane %v1130, 1
      %v1458 = vsel %vm1451, %v1455, %v1457
      %v1459 = vrot.slane %v1131, 1
      %v1460 = vsel %vm1451, %v1457, %v1459
      %v1462 = vsel %vm268, %v1454, 0
      %v1465 = vsel %vm268, %v1456, 0
      %v1468 = vsel %vm268, %v1458, 0
      %v1471 = vsel %vm268, %v1460, 0
      %v1474 = vsel %vm268, %v1459, 0
      %v1477 = vand.u32 %v1447, %v287
      %1479 = vmatprep.subr.bf16.mxu0 0
      %1480 = vmatpush1.bf16.msra.mxu0 %v1477
      %1481 = vmatprep.subr.bf16.mxu0 0
      %1482 = vmatpush1.bf16.msra.mxu0 0
      %1483 = vmatprep.subr.bf16.mxu0 0
      %1484 = vmatpush1.bf16.msra.mxu0 0
      %1485 = vmatprep.subr.bf16.mxu0 0
      %1486 = vmatpush1.bf16.msra.mxu0 0
      %1487 = vmatprep.subr.bf16.mxu0 0
      %1488 = vmatpush1.bf16.msra.mxu0 0
      %1489 = vmatprep.subr.bf16.mxu0 0
      %1490 = vmatpush1.bf16.msra.mxu0 0
      %1491 = vmatprep.subr.bf16.mxu0 0
      %1492 = vmatpush1.bf16.msra.mxu0 0
      %1493 = vmatprep.subr.bf16.mxu0 0
      %1494 = vmatpush1.bf16.msra.mxu0 0
      %1495 = vmatprep.subr.bf16.mxu0 0
      %1496 = vmatpush1.bf16.msra.mxu0 0
      %1497 = vmatprep.subr.bf16.mxu0 0
      %1498 = vmatpush1.bf16.msra.mxu0 0
      %1499 = vmatprep.subr.bf16.mxu0 0
      %1500 = vmatpush1.bf16.msra.mxu0 0
      %1501 = vmatprep.subr.bf16.mxu0 0
      %1502 = vmatpush1.bf16.msra.mxu0 0
      %1503 = vmatprep.subr.bf16.mxu0 0
      %1504 = vmatpush1.bf16.msra.mxu0 0
      %1505 = vmatprep.subr.bf16.mxu0 0
      %1506 = vmatpush1.bf16.msra.mxu0 0
      %1507 = vmatprep.subr.bf16.mxu0 0
      %1508 = vmatpush1.bf16.msra.mxu0 0
      %1509 = vmatprep.subr.bf16.mxu0 0
      %1510 = vmatpush1.bf16.msra.mxu0 0
      %1511 = vmatprep.mubr.bf16.mxu0 0
      %1512 = vmatmul.mubr.bf16.gmra.mrb[0].mxu0 %v1462
      %v1513 = vpop.f32.mrb[0].mxu0
      %v1514 = vadd.f32 0.0, %v1513
      %v1515 = vpop.f32.mrb[0].mxu0
      %v1516 = vpop.f32.mrb[0].mxu0
      %v1517 = vadd.f32 0.0, %v1516
      %v1518 = vpop.f32.mrb[0].mxu0
      %1519 = vmatprep.mubr.bf16.mxu0 0
      %1520 = vmatmul.mubr.bf16.gmra.mrb[0].mxu0 %v1465
      %v1521 = vpop.f32.mrb[0].mxu0
      %v1522 = vadd.f32 0.0, %v1521
      %v1523 = vpop.f32.mrb[0].mxu0
      %v1524 = vpop.f32.mrb[0].mxu0
      %v1525 = vadd.f32 0.0, %v1524
      %v1526 = vpop.f32.mrb[0].mxu0
      %1527 = vmatprep.mubr.bf16.mxu0 0
      %1528 = vmatmul.mubr.bf16.gmra.mrb[0].mxu0 %v1468
      %v1529 = vpop.f32.mrb[0].mxu0
      %v1530 = vadd.f32 0.0, %v1529
      %v1531 = vpop.f32.mrb[0].mxu0
      %v1532 = vpop.f32.mrb[0].mxu0
      %v1533 = vadd.f32 0.0, %v1532
      %v1534 = vpop.f32.mrb[0].mxu0
      %1535 = vmatprep.mubr.bf16.mxu0 0
      %1536 = vmatmul.mubr.bf16.gmra.mrb[0].mxu0 %v1471
      %v1537 = vpop.f32.mrb[0].mxu0
      %v1538 = vadd.f32 0.0, %v1537
      %v1539 = vpop.f32.mrb[0].mxu0
      %v1540 = vpop.f32.mrb[0].mxu0
      %v1541 = vadd.f32 0.0, %v1540
      %v1542 = vpop.f32.mrb[0].mxu0
      %1543 = vmatprep.mubr.bf16.mxu0 0
      %1544 = vmatmul.mubr.bf16.gmra.mrb[0].mxu0 %v1474
      %v1545 = vpop.f32.mrb[0].mxu0
      %v1546 = vadd.f32 0.0, %v1545
      %v1547 = vpop.f32.mrb[0].mxu0
      %v1548 = vpop.f32.mrb[0].mxu0
      %v1549 = vpop.f32.mrb[0].mxu0
      %1550 = vdwg.mxu0
      %v1551 = vadd.f32 %v1436, %v1514
      %v1552 = vadd.f32 %v1437, %v1517
      %v1553 = vadd.f32 %v1438, %v1522
      %v1554 = vadd.f32 %v1439, %v1525
      %v1555 = vadd.f32 %v1440, %v1530
      %v1556 = vadd.f32 %v1441, %v1533
      %v1557 = vadd.f32 %v1442, %v1538
      %v1558 = vadd.f32 %v1443, %v1541
      %v1559 = vadd.f32 %v1444, %v1546
      %v1560 = vld [vmem:[%s213] sm:$0x1]
      %v1562 = vlaneseq
      %v1563 = vshrl.u32 %v1562, 7
      %v1564 = vsub.s32 0, %v1563
      %v1565 = vrot.slane %v1560, %v1564
      %v1567 = vadd.f32 %v1551, %v1565
      %v1568 = vadd.f32 %v1552, %v1565
      %v1569 = vadd.f32 %v1553, %v1565
      %v1570 = vadd.f32 %v1554, %v1565
      %v1571 = vadd.f32 %v1555, %v1565
      %v1572 = vadd.f32 %v1556, %v1565
      %v1573 = vadd.f32 %v1557, %v1565
      %v1574 = vadd.f32 %v1558, %v1565
      %v1575 = vadd.f32 %v1559, %v1565
      %v1576 = vmax.f32 %v1567, 0.0
      %v1577 = vmax.f32 %v1568, 0.0
      %v1578 = vmax.f32 %v1569, 0.0
      %v1579 = vmax.f32 %v1570, 0.0
      %v1580 = vmax.f32 %v1571, 0.0
      %v1581 = vmax.f32 %v1572, 0.0
      %v1582 = vmax.f32 %v1573, 0.0
      %v1583 = vmax.f32 %v1574, 0.0
      %v1584 = vmax.f32 %v1575, 0.0
      %v1585 = vpack.c.bf16 %v1577, %v1576
      %v1586 = vpack.c.bf16 %v1579, %v1578
      %v1587 = vpack.c.bf16 %v1581, %v1580
      %v1588 = vpack.c.bf16 %v1583, %v1582
      %v1589 = vpack.c.bf16 %v1584, %v1584
      %v1595 = vunpack.c.l.b16 %v1585
      %v1596 = vunpack.c.h.b16 %v1585
      %v1597 = vunpack.c.l.b16 %v1586
      %v1598 = vunpack.c.h.b16 %v1586
      %v1599 = vunpack.c.l.b16 %v1587
      %v1600 = vunpack.c.h.b16 %v1587
      %v1601 = vunpack.c.l.b16 %v1588
      %v1602 = vunpack.c.h.b16 %v1588
      %v1603 = vunpack.c.l.b16 %v1589
      %v1604 = vpack.c.b16 %v1595, %v1595
      %v1605 = vpack.c.b16 %v1596, %v1596
      %v1606 = vpack.c.b16 %v1597, %v1597
      %v1607 = vpack.c.b16 %v1598, %v1598
      %v1608 = vpack.c.b16 %v1599, %v1599
      %v1609 = vpack.c.b16 %v1600, %v1600
      %v1610 = vpack.c.b16 %v1601, %v1601
      %v1611 = vpack.c.b16 %v1602, %v1602
      %v1612 = vpack.c.b16 %v1603, %v1603
      %vm1622 = vcmask 257024
      %1623 = vst.msk [vmem:[%s221] sm:$0xf] %vm1622, %v1604
      %1624 = vst.msk [vmem:[%s221 + $0x4] sm:$0xf] %vm1622, %v1605
      %1625 = vst.msk [vmem:[%s221 + $0x8] sm:$0xf] %vm1622, %v1606
      %1626 = vst.msk [vmem:[%s221 + $0xc] sm:$0xf] %vm1622, %v1607
      %1627 = vst.msk [vmem:[%s221 + $0x10] sm:$0xf] %vm1622, %v1608
      %1628 = vst.msk [vmem:[%s221 + $0x14] sm:$0xf] %vm1622, %v1609
      %1629 = vst.msk [vmem:[%s221 + $0x18] sm:$0xf] %vm1622, %v1610
      %1630 = vst.msk [vmem:[%s221 + $0x1c] sm:$0xf] %vm1622, %v1611
      %1631 = vst.msk [vmem:[%s221 + $0x20] sm:$0xf] %vm1622, %v1612
      %p1632 = scmp.lt.s32.totalorder %s18, 1
      %s1633 = scalar_select %p1632, %s18, 1
      %p1634 = scmp.lt.s32.totalorder %s19, 0
      %s1635 = scalar_select %p1634, %s19, 0
      %s1636 = smul.addr %s1633, 9
      %s1637 = sadd.s32 %s1635, %s1636
      %s1638 = smul.addr %s1637, 4
      %s1639 = scalar_lea.vmem %s3, %s1638
      // Predicated region
      $region33: #{tpu_custom_call.1} parent=31 // pred_check
        %p1640 = pneg %p124
      $region34: #{tpu_custom_call.1} parent=31 // pred_check_branch
        %1642 = sbr.rel (%p1640) target = $region36
      $region35: #{tpu_custom_call.1} parent=31 // pred_region
        _
      $region36: #{tpu_custom_call.1} parent=31 // pred_fallthru
        _
    $region32: #{tpu_custom_call.1} parent=5 // pred_fallthru
      _
    %p1643 = scmp.le.s32.totalorder 2, %s9
    // Predicated region
    $region37: #{tpu_custom_call.1} parent=5 // pred_check
      %p1644 = pneg %p1643
    $region38: #{tpu_custom_call.1} parent=5 // pred_check_branch
      %1646 = sbr.rel (%p1644) target = $region40
    $region39: #{tpu_custom_call.1} parent=5 // pred_region
      %s1647 = ssub.s32 %s9, 2
      // Predicated region
      $region41: #{tpu_custom_call.1} parent=39 // pred_check
        %p1648 = pneg %p130
      $region42: #{tpu_custom_call.1} parent=39 // pred_check_branch
        %1650 = sbr.rel (%p1648) target = $region44
      $region43: #{tpu_custom_call.1} parent=39 // pred_region
        %p1651 = scmp.lt.s32.totalorder %s20, 1
        %s1652 = scalar_select %p1651, %s20, 1
        %p1653 = scmp.lt.s32.totalorder %s21, 0
        %s1654 = scalar_select %p1653, %s21, 0
        %s1655 = smul.addr %s1652, 9
        %s1656 = sadd.s32 %s1654, %s1655
        %s1657 = smul.addr %s1656, 4
        %s1658 = scalar_lea.vmem %s3, %s1657
      $region44: #{tpu_custom_call.1} parent=39 // pred_fallthru
        _
    $region40: #{tpu_custom_call.1} parent=5 // pred_fallthru
      _
  $region6: #{tpu_custom_call.1} parent=0 // loop_footer
    %s13 = sadd.s32 1, %s9
  $region7: #{tpu_custom_call.1} parent=0 // loop_footer_branch
    %8 = sbr.rel target = $region3
  $region8: #{tpu_custom_call.1} parent=0 // loop_exit
    _

</llo_original>
